<compile_context>
chip_gen: v7x
topology: tpu7x:2x2x1
jax: 0.10.0
libtpu: 0.0.40
codegen_flags: <defaults>
</compile_context>

<pallas_src>
import math
import functools

import jax
import jax.numpy as jnp
from jax.experimental import pallas as pl
from jax.experimental.pallas import tpu as pltpu

# ----------------- small synthetic AudioAdapter config -----------------
AUDIO_FEATURE_DIM = 64
NUM_TOKENS = 8
MLP_DIMS = (32, 32, NUM_TOKENS * AUDIO_FEATURE_DIM)          # (32, 32, 512)
ATTN_HEAD_DIM = 16
NUM_ATTN_HEADS = 4
DIM = ATTN_HEAD_DIM * NUM_ATTN_HEADS                         # 64  (model dim of CA / latents)
BASE_NUM_LAYERS = 2
INTERVAL = 1
TIME_FREQ_DIM = 32
PROJ_TRANSFORMER_LAYERS = 1
N_NEIGHBORS = (2, 2)
AUDIO_FRAMES = sum(N_NEIGHBORS) + 1                          # 5
KV_DIM = MLP_DIMS[-1] // NUM_TOKENS                          # 64
NUM_TOKENS_X4 = NUM_TOKENS * 4                               # 32
DEC_HEADS = max(1, AUDIO_FEATURE_DIM // 64)                  # 1
LN_EPS = 1e-5

MXU_DTYPE = jnp.bfloat16   # native MXU input dtype on v6e/v7x; f32 accumulation


# ======================= in-kernel helpers =======================
def _mxu(a, b):
    """Matmul on the MXU with bf16 operands and f32 accumulation."""
    return jnp.dot(a.astype(MXU_DTYPE), b.astype(MXU_DTYPE),
                   preferred_element_type=jnp.float32)


def _qk(a, b):
    """A @ B^T (contract last dims) on the MXU, f32 accumulation."""
    return jax.lax.dot_general(a.astype(MXU_DTYPE), b.astype(MXU_DTYPE),
                               (((1,), (1,)), ((), ())),
                               preferred_element_type=jnp.float32)


def _silu(y):
    # sigmoid via EUP exp + approx reciprocal (keeps the divide off the VALU)
    return y * pl.reciprocal(1.0 + jnp.exp(-y), approx=True)


def _ln(x, g, b, eps):
    mu = jnp.mean(x, axis=-1, keepdims=True)
    var = jnp.mean(jnp.square(x - mu), axis=-1, keepdims=True)
    return (x - mu) * jax.lax.rsqrt(var + eps) * g + b


def _ln_noaffine(x, eps):
    mu = jnp.mean(x, axis=-1, keepdims=True)
    var = jnp.mean(jnp.square(x - mu), axis=-1, keepdims=True)
    return (x - mu) * jax.lax.rsqrt(var + eps)


def _attention(q, k, v, num_heads):
    """Softmax attention on (Lq, D)/(Lk, D) tiles; heads via a small unrolled loop."""
    D = q.shape[-1]
    hd = D // num_heads
    scale = 1.0 / math.sqrt(hd)
    outs = []
    for h in range(num_heads):
        lo, hi = h * hd, (h + 1) * hd
        s = _qk(q[:, lo:hi] * scale, k[:, lo:hi])              # (Lq, Lk)
        m = jnp.max(s, axis=-1, keepdims=True)
        p = jnp.exp(s - m)
        p = p * pl.reciprocal(jnp.sum(p, axis=-1, keepdims=True), approx=True)
        outs.append(_mxu(p, v[:, lo:hi]))                      # (Lq, hd)
    return outs[0] if num_heads == 1 else jnp.concatenate(outs, axis=-1)


def _full_spec(a):
    """BlockSpec covering the whole array, independent of the grid position."""
    nd = a.ndim
    return pl.BlockSpec(a.shape, lambda *_, _nd=nd: (0,) * _nd)


# ======================= fused Pallas kernels =======================
def _decoder_layer_kernel(tgt_ref, mem_ref,
                          sa_wqkv_ref, sa_bqkv_ref, sa_wo_ref, sa_bo_ref,
                          ca_wq_ref, ca_bq_ref, ca_wkv_ref, ca_bkv_ref, ca_wo_ref, ca_bo_ref,
                          ff_w1_ref, ff_b1_ref, ff_w2_ref, ff_b2_ref,
                          n1g_ref, n1b_ref, n2g_ref, n2b_ref, n3g_ref, n3b_ref,
                          o_ref, *, num_heads, eps):
    """nn.TransformerDecoderLayer (post-norm, relu, dropout=0) for one batch element."""
    x = tgt_ref[0].astype(jnp.float32)            # (Lt, D)
    mem = mem_ref[0].astype(jnp.float32)          # (Lm, D)
    D = x.shape[-1]

    # --- self attention (fused QKV projection) + residual + LN ---
    qkv = _mxu(x, sa_wqkv_ref[...]) + sa_bqkv_ref[...]
    q, k, v = qkv[:, :D], qkv[:, D:2 * D], qkv[:, 2 * D:]
    sa = _mxu(_attention(q, k, v, num_heads), sa_wo_ref[...]) + sa_bo_ref[...]
    x = _ln(x + sa, n1g_ref[...], n1b_ref[...], eps)

    # --- cross attention (fused KV projection) + residual + LN ---
    q = _mxu(x, ca_wq_ref[...]) + ca_bq_ref[...]
    kv = _mxu(mem, ca_wkv_ref[...]) + ca_bkv_ref[...]
    k, v = kv[:, :D], kv[:, D:]
    ca = _mxu(_attention(q, k, v, num_heads), ca_wo_ref[...]) + ca_bo_ref[...]
    x = _ln(x + ca, n2g_ref[...], n2b_ref[...], eps)

    # --- feed forward + residual + LN ---
    h = jnp.maximum(_mxu(x, ff_w1_ref[...]) + ff_b1_ref[...], 0.0)
    ff = _mxu(h, ff_w2_ref[...]) + ff_b2_ref[...]
    x = _ln(x + ff, n3g_ref[...], n3b_ref[...], eps)

    o_ref[0] = x.astype(o_ref.dtype)


def _audio_mlp_ln_kernel(xp_ref, w0_ref, b0_ref, w1_ref, b1_ref, w2_ref, b2_ref,
                         g_ref, be_ref, o_ref, *, window, n_tokens, eps):
    """Window build (unfold) + relu-MLP chain + grouped LayerNorm, all VMEM resident."""
    xp = xp_ref[0].astype(jnp.float32)            # (Tv + window - 1, C)
    Tv = o_ref.shape[1]
    # 'B T C W -> B T (W C)' unfold, built from sublane-shifted slices
    u = jnp.concatenate([xp[w:w + Tv, :] for w in range(window)], axis=-1)
    h = jnp.maximum(_mxu(u, w0_ref[...]) + b0_ref[...], 0.0)
    h = jnp.maximum(_mxu(h, w1_ref[...]) + b1_ref[...], 0.0)
    y = _mxu(h, w2_ref[...]) + b2_ref[...]        # (Tv, n_tokens * kv_dim)

    kvd = y.shape[-1] // n_tokens
    g = g_ref[...]
    be = be_ref[...]
    segs = []
    for t in range(n_tokens):                     # grouped LayerNorm over each kv_dim chunk
        segs.append(_ln(y[:, t * kvd:(t + 1) * kvd], g, be, eps))
    o_ref[0] = jnp.concatenate(segs, axis=-1).astype(o_ref.dtype)   # lane-dense store


def _time_mlp_kernel(emb_ref, w1_ref, b1_ref, w2_ref, b2_ref, wp_ref, bp_ref, o_ref):
    """TimestepEmbedding (linear-silu-linear) + silu + time_proj, fused."""
    e = emb_ref[...].astype(jnp.float32)
    t = _silu(_mxu(e, w1_ref[...]) + b1_ref[...])
    t = _mxu(t, w2_ref[...]) + b2_ref[...]
    o_ref[...] = (_mxu(_silu(t), wp_ref[...]) + bp_ref[...]).astype(o_ref.dtype)


def _perceiver_ca_kernel(x_ref, lat_ref, temb_ref, ssg_ref,
                         nkv_g_ref, nkv_b_ref,
                         wq_ref, bq_ref, wkv_ref, bkv_ref, wo_ref, bo_ref,
                         o_ref, *, num_heads, weight, eps):
    """PerceiverAttentionCA (adaLN=True) for one (batch, latent_frame) segment,
    with the residual add into the latents fused as the epilogue."""
    xkv = x_ref[0, 0].astype(jnp.float32)         # (N4, kv_dim)
    lat = lat_ref[0, 0].astype(jnp.float32)       # (hw, D)
    ssg = temb_ref[0].astype(jnp.float32) + ssg_ref[0].astype(jnp.float32)   # (3, D)
    shift, scale, gate = ssg[0:1, :], ssg[1:2, :], ssg[2:3, :]

    x_n = _ln(xkv, nkv_g_ref[...], nkv_b_ref[...], eps)
    lat_m = _ln_noaffine(lat, eps) * (1.0 + scale) + shift          # adaLN modulation

    q = _mxu(lat_m, wq_ref[...]) + bq_ref[...]                      # (hw, D)
    kv = _mxu(x_n, wkv_ref[...]) + bkv_ref[...]                     # (N4, 2D)
    D = q.shape[-1]
    k, v = kv[:, :D], kv[:, D:]

    attn = _attention(q, k, v, num_heads)                           # (hw, D)
    out = _mxu(attn, wo_ref[...]) + bo_ref[...]
    o_ref[0, 0] = (lat + out * gate * weight).astype(o_ref.dtype)


# ======================= wrappers =======================
def transformer_decoder_layer(p, tgt, memory, num_heads):
    B, Lt, d = tgt.shape
    Lm = memory.shape[1]
    r = lambda v: v.reshape(1, -1)
    sa, ca = p["self_attn"], p["cross_attn"]
    weights = [sa["wqkv"], r(sa["bqkv"]), sa["wo"], r(sa["bo"]),
               ca["wq"], r(ca["bq"]), ca["wkv"], r(ca["bkv"]), ca["wo"], r(ca["bo"]),
               p["ff_w1"], r(p["ff_b1"]), p["ff_w2"], r(p["ff_b2"]),
               r(p["norm1_g"]), r(p["norm1_b"]), r(p["norm2_g"]), r(p["norm2_b"]),
               r(p["norm3_g"]), r(p["norm3_b"])]
    return pl.pallas_call(
        functools.partial(_decoder_layer_kernel, num_heads=num_heads, eps=LN_EPS),
        out_shape=jax.ShapeDtypeStruct((B, Lt, d), tgt.dtype),
        grid=(B,),
        in_specs=[pl.BlockSpec((1, Lt, d), lambda b: (b, 0, 0)),
                  pl.BlockSpec((1, Lm, d), lambda b: (b, 0, 0))]
                 + [_full_spec(w) for w in weights],
        out_specs=pl.BlockSpec((1, Lt, d), lambda b: (b, 0, 0)),
        compiler_params=pltpu.CompilerParams(dimension_semantics=("parallel",)),
    )(tgt, memory, *weights)


def linear_interpolation(features, output_len):
    """torch: F.interpolate(x.transpose(1,2), size=L, mode='linear', align_corners=False).transpose(1,2)"""
    B, T_in, C = features.shape
    scale = T_in / output_len
    dst = jnp.arange(output_len, dtype=jnp.float32)
    src = jnp.maximum(scale * (dst + 0.5) - 0.5, 0.0)
    i0 = jnp.minimum(jnp.floor(src).astype(jnp.int32), T_in - 1)
    i1 = jnp.minimum(i0 + 1, T_in - 1)
    lam = src - i0.astype(jnp.float32)
    f0 = features[:, i0, :]
    f1 = features[:, i1, :]
    return f0 * (1.0 - lam)[None, :, None] + f1 * lam[None, :, None]


def audio_projection(p, audio_feature, latent_frame):
    video_frame = (latent_frame - 1) * 4 + 1
    af_ori = audio_feature
    af = linear_interpolation(af_ori, video_frame)
    for lyr in p["decoder_layers"]:
        af = transformer_decoder_layer(lyr, af, af_ori, DEC_HEADS)

    # replicate pad in plain JAX; window build + MLP chain + grouped LN fused in one kernel
    af_pad = jnp.pad(af, ((0, 0), (N_NEIGHBORS[0], N_NEIGHBORS[1]), (0, 0)), mode="edge")
    B, Tp, C = af_pad.shape
    Tv = video_frame
    r = lambda v: v.reshape(1, -1)
    weights = [p["mlp0_w"], r(p["mlp0_b"]), p["mlp1_w"], r(p["mlp1_b"]),
               p["mlp2_w"], r(p["mlp2_b"]), r(p["norm_g"]), r(p["norm_b"])]
    out = pl.pallas_call(
        functools.partial(_audio_mlp_ln_kernel, window=AUDIO_FRAMES,
                          n_tokens=NUM_TOKENS, eps=LN_EPS),
        out_shape=jax.ShapeDtypeStruct((B, Tv, NUM_TOKENS * KV_DIM), af.dtype),
        grid=(B,),
        in_specs=[pl.BlockSpec((1, Tp, C), lambda b: (b, 0, 0))]
                 + [_full_spec(w) for w in weights],
        out_specs=pl.BlockSpec((1, Tv, NUM_TOKENS * KV_DIM), lambda b: (b, 0, 0)),
        compiler_params=pltpu.CompilerParams(dimension_semantics=("parallel",)),
    )(af_pad, *weights)
    return out.reshape(B, Tv, NUM_TOKENS, KV_DIM)


def rearange_audio_features(x):
    x0 = jnp.repeat(x[:, :1], 4, axis=1)
    x = jnp.concatenate([x0, x[:, 1:]], axis=1)                      # (B, 4*latent_frame, N, C)
    B, TS, N, C = x.shape
    return x.reshape(B, TS // 4, 4 * N, C)                           # 'B (T S) N C -> B T (S N) C'


def time_embedding_forward(p, timestep):
    B = timestep.shape[0]
    half = TIME_FREQ_DIM // 2
    exponent = -math.log(10000.0) * jnp.arange(half, dtype=jnp.float32) / float(half)
    freqs = jnp.exp(exponent)
    ang = timestep.astype(jnp.float32)[:, None] * freqs[None, :]
    emb = jnp.concatenate([jnp.cos(ang), jnp.sin(ang)], axis=-1)     # flip_sin_to_cos=True
    r = lambda v: v.reshape(1, -1)
    args = [emb, p["te_w1"], r(p["te_b1"]), p["te_w2"], r(p["te_b2"]),
            p["tp_w"], r(p["tp_b"])]
    out = pl.pallas_call(
        _time_mlp_kernel,
        out_shape=jax.ShapeDtypeStruct((B, 3 * DIM), jnp.float32),
        grid=(1,),
        in_specs=[_full_spec(a) for a in args],
        out_specs=pl.BlockSpec((B, 3 * DIM), lambda i: (0, 0)),
    )(*args)
    return out.reshape(B, 3, DIM)


def get_q_lens_audio_range(batchsize, n_tokens_per_rank, n_query_tokens, n_tokens_per_frame, sp_rank):
    if n_query_tokens == 0:
        return [1] * batchsize, 0, 1
    idx0 = n_tokens_per_rank * sp_rank
    first_length = idx0 - idx0 // n_tokens_per_frame * n_tokens_per_frame
    n_frames = (n_query_tokens - first_length) // n_tokens_per_frame
    last_length = n_query_tokens - n_frames * n_tokens_per_frame - first_length
    q_lens = []
    if first_length > 0:
        q_lens.append(first_length)
    q_lens += [n_tokens_per_frame] * n_frames
    if last_length > 0:
        q_lens.append(last_length)
    t0 = idx0 // n_tokens_per_frame
    idx1 = idx0 + n_query_tokens
    t1 = math.ceil(idx1 / n_tokens_per_frame)
    return q_lens * batchsize, t0, t1


def perceiver_ca_fused(p, x_full, latents, t_emb, *, hw, t0, t1, weight):
    """Fused PerceiverAttentionCA; returns latents + residual  (B, T*hw, D)."""
    B, n_q, D = latents.shape
    T = t1 - t0
    N4, kvd = x_full.shape[2], x_full.shape[3]
    lat4 = latents.reshape(B, T, hw, D)
    r = lambda v: v.reshape(1, -1)
    const_args = [p["shift_scale_gate"],
                  r(p["norm_kv_g"]), r(p["norm_kv_b"]),
                  p["to_q_w"], r(p["to_q_b"]), p["to_kv_w"], r(p["to_kv_b"]),
                  p["to_out_w"], r(p["to_out_b"])]
    out = pl.pallas_call(
        functools.partial(_perceiver_ca_kernel, num_heads=NUM_ATTN_HEADS,
                          weight=float(weight), eps=LN_EPS),
        out_shape=jax.ShapeDtypeStruct((B, T, hw, D), latents.dtype),
        grid=(B, T),
        in_specs=[pl.BlockSpec((1, 1, N4, kvd), lambda b, t: (b, t0 + t, 0, 0)),
                  pl.BlockSpec((1, 1, hw, D), lambda b, t: (b, t, 0, 0)),
                  pl.BlockSpec((1, 3, D), lambda b, t: (b, 0, 0))]
                 + [_full_spec(a) for a in const_args],
        out_specs=pl.BlockSpec((1, 1, hw, D), lambda b, t: (b, t, 0, 0)),
        compiler_params=pltpu.CompilerParams(dimension_semantics=("parallel", "parallel")),
    )(x_full, lat4, t_emb, *const_args)
    return out.reshape(B, T * hw, D)


def modify_hidden_states(hidden_states, grid_sizes, ca_params, x, t_emb, weight):
    if hidden_states.ndim == 2:
        hidden_states = hidden_states[None]
    t, h, w = grid_sizes[0]
    n_tokens = t * h * w
    bs, n_tokens_per_rank = hidden_states.shape[:2]
    tail_length = n_tokens_per_rank - n_tokens
    n_query_tokens = n_tokens_per_rank - tail_length % n_tokens_per_rank
    if n_query_tokens == 0:
        # reference zeroes the residual in this case -> hidden_states unchanged
        if hidden_states.shape[0] == 1:
            hidden_states = hidden_states[0]
        return hidden_states
    h_aligned = hidden_states[:, :n_query_tokens]
    h_tail = hidden_states[:, n_query_tokens:]
    q_lens, t0, t1 = get_q_lens_audio_range(bs, n_tokens_per_rank, n_query_tokens, h * w, 0)
    # TODO(synk): general ragged q_lens (partial first/last frames under sequence parallel)
    #             would need a varlen-masked attention kernel; here segments are uniform (= h*w).
    assert all(l == h * w for l in q_lens), "fused kernel path assumes uniform per-frame q_lens"
    new_aligned = perceiver_ca_fused(ca_params, x, h_aligned, t_emb,
                                     hw=h * w, t0=t0, t1=t1, weight=weight)
    hidden_states = jnp.concatenate([new_aligned, h_tail], axis=1)
    if hidden_states.shape[0] == 1:
        hidden_states = hidden_states[0]
    return hidden_states


def audio_adapter_forward(params, audio_feat, timestep, latent_frame, weight=1.0):
    x = audio_projection(params["audio_proj"], audio_feat, latent_frame)
    x = rearange_audio_features(x)
    x = x + params["audio_pe"]
    t_emb = time_embedding_forward(params["time_embedding"], timestep)
    ret_dict = {}
    for block_idx, base_idx in enumerate(range(0, BASE_NUM_LAYERS, INTERVAL)):
        ca_p = params["ca"][block_idx]

        def modify_func(hidden_states, grid_sizes, _p=ca_p, _x=x, _t=t_emb, _w=weight):
            return modify_hidden_states(hidden_states, grid_sizes, _p, _x, _t, _w)

        ret_dict[base_idx] = {"kwargs": {"x": x, "t_emb": t_emb, "weight": weight},
                              "modify_func": modify_func}
    return x, t_emb, ret_dict


# ======================= deterministic parameter init =======================
def init_params(seed=0):
    keys = iter(jax.random.split(jax.random.PRNGKey(seed), 512))
    nk = lambda: next(keys)

    def lin(fan_in, fan_out):
        return (jax.random.normal(nk(), (fan_in, fan_out), jnp.float32) * 0.02,
                jnp.zeros((fan_out,), jnp.float32))

    def ln(d):
        return jnp.ones((d,), jnp.float32), jnp.zeros((d,), jnp.float32)

    def self_attn(d):
        wqkv, bqkv = lin(d, 3 * d); wo, bo = lin(d, d)
        return {"wqkv": wqkv, "bqkv": bqkv, "wo": wo, "bo": bo}

    def cross_attn(d):
        wq, bq = lin(d, d); wkv, bkv = lin(d, 2 * d); wo, bo = lin(d, d)
        return {"wq": wq, "bq": bq, "wkv": wkv, "bkv": bkv, "wo": wo, "bo": bo}

    def decoder_layer(d):
        ff_w1, ff_b1 = lin(d, 4 * d)
        ff_w2, ff_b2 = lin(4 * d, d)
        n1g, n1b = ln(d); n2g, n2b = ln(d); n3g, n3b = ln(d)
        return {"self_attn": self_attn(d), "cross_attn": cross_attn(d),
                "ff_w1": ff_w1, "ff_b1": ff_b1, "ff_w2": ff_w2, "ff_b2": ff_b2,
                "norm1_g": n1g, "norm1_b": n1b, "norm2_g": n2g, "norm2_b": n2b,
                "norm3_g": n3g, "norm3_b": n3b}

    in_dim = AUDIO_FEATURE_DIM * AUDIO_FRAMES
    m0w, m0b = lin(in_dim, MLP_DIMS[0])
    m1w, m1b = lin(MLP_DIMS[0], MLP_DIMS[1])
    m2w, m2b = lin(MLP_DIMS[1], MLP_DIMS[2])
    ng, nb = ln(KV_DIM)
    audio_proj = {"decoder_layers": [decoder_layer(AUDIO_FEATURE_DIM)
                                     for _ in range(PROJ_TRANSFORMER_LAYERS)],
                  "mlp0_w": m0w, "mlp0_b": m0b, "mlp1_w": m1w, "mlp1_b": m1b,
                  "mlp2_w": m2w, "mlp2_b": m2b, "norm_g": ng, "norm_b": nb}

    def ca_block():
        nkg, nkb = ln(KV_DIM)
        qw, qb = lin(DIM, DIM)
        kvw, kvb = lin(KV_DIM, 2 * DIM)
        ow, ob = lin(DIM, DIM)
        ssg = jax.random.normal(nk(), (1, 3, DIM), jnp.float32) / math.sqrt(DIM)
        return {"norm_kv_g": nkg, "norm_kv_b": nkb,
                "to_q_w": qw, "to_q_b": qb, "to_kv_w": kvw, "to_kv_b": kvb,
                "to_out_w": ow, "to_out_b": ob, "shift_scale_gate": ssg}

    ca_num = math.ceil(BASE_NUM_LAYERS / INTERVAL)
    te_w1, te_b1 = lin(TIME_FREQ_DIM, DIM)
    te_w2, te_b2 = lin(DIM, DIM)
    tp_w, tp_b = lin(DIM, DIM * 3)
    return {"audio_proj": audio_proj,
            "audio_pe": jax.random.normal(nk(), (NUM_TOKENS_X4, KV_DIM), jnp.float32) * 0.02,
            "ca": [ca_block() for _ in range(ca_num)],
            "time_embedding": {"te_w1": te_w1, "te_b1": te_b1, "te_w2": te_w2, "te_b2": te_b2,
                               "tp_w": tp_w, "tp_b": tp_b}}


# ======================= main =======================
if __name__ == "__main__":
    params = init_params(0)
    k_audio, k_hidden = jax.random.split(jax.random.PRNGKey(0), 2)

    latent_frame = 3                                  # -> video_frame = 9, audio frames grouped to 3
    audio_feat = jax.random.normal(k_audio, (2, 12, AUDIO_FEATURE_DIM), jnp.float32)
    timestep = jnp.array([500.0, 250.0], jnp.float32)

    x, t_emb, ret_dict = audio_adapter_forward(params, audio_feat, timestep,
                                               latent_frame=latent_frame, weight=1.0)

    # exercise one of the returned modify_func closures (PerceiverAttentionCA hot path)
    grid_sizes = [(3, 2, 4)]                          # t, h, w  -> 24 hidden tokens, 8 per frame
    hidden_states = jax.random.normal(k_hidden, (2, 24, DIM), jnp.float32)
    new_hidden = ret_dict[0]["modify_func"](hidden_states, grid_sizes)

    jax.block_until_ready((x, t_emb, new_hidden))
    assert x.shape == (2, latent_frame, NUM_TOKENS_X4, KV_DIM)
    assert t_emb.shape == (2, 3, DIM)
    assert new_hidden.shape == (2, 24, DIM)
    print("KERNEL_OK")
</pallas_src>

<mosaic_0001>
module attributes {stable_mosaic.version = 11 : i64} {
  func.func @_decoder_layer_kernel(%arg0: i32, %arg1: memref<1x9x64xf32, #tpu.memory_space<vmem>>, %arg2: memref<1x12x64xf32, #tpu.memory_space<vmem>>, %arg3: memref<64x192xf32, #tpu.memory_space<vmem>>, %arg4: memref<1x192xf32, #tpu.memory_space<vmem>>, %arg5: memref<64x64xf32, #tpu.memory_space<vmem>>, %arg6: memref<1x64xf32, #tpu.memory_space<vmem>>, %arg7: memref<64x64xf32, #tpu.memory_space<vmem>>, %arg8: memref<1x64xf32, #tpu.memory_space<vmem>>, %arg9: memref<64x128xf32, #tpu.memory_space<vmem>>, %arg10: memref<1x128xf32, #tpu.memory_space<vmem>>, %arg11: memref<64x64xf32, #tpu.memory_space<vmem>>, %arg12: memref<1x64xf32, #tpu.memory_space<vmem>>, %arg13: memref<64x256xf32, #tpu.memory_space<vmem>>, %arg14: memref<1x256xf32, #tpu.memory_space<vmem>>, %arg15: memref<256x64xf32, #tpu.memory_space<vmem>>, %arg16: memref<1x64xf32, #tpu.memory_space<vmem>>, %arg17: memref<1x64xf32, #tpu.memory_space<vmem>>, %arg18: memref<1x64xf32, #tpu.memory_space<vmem>>, %arg19: memref<1x64xf32, #tpu.memory_space<vmem>>, %arg20: memref<1x64xf32, #tpu.memory_space<vmem>>, %arg21: memref<1x64xf32, #tpu.memory_space<vmem>>, %arg22: memref<1x64xf32, #tpu.memory_space<vmem>>, %arg23: memref<1x9x64xf32, #tpu.memory_space<vmem>>) attributes {dimension_semantics = [#tpu.dimension_semantics<parallel>], iteration_bounds = array<i64: 2>, scalar_prefetch = 0 : i64, scratch_operands = 0 : i64, tpu.core_type = #tpu.core_type<tc>, window_params = [{transform_indices = @transform_0, window_bounds = array<i64: 1, 9, 64>}, {transform_indices = @transform_1, window_bounds = array<i64: 1, 12, 64>}, {pipeline_mode = #tpu.pipeline_mode<synchronous>, transform_indices = @transform_2, window_bounds = array<i64: 64, 192>}, {pipeline_mode = #tpu.pipeline_mode<synchronous>, transform_indices = @transform_3, window_bounds = array<i64: 1, 192>}, {pipeline_mode = #tpu.pipeline_mode<synchronous>, transform_indices = @transform_4, window_bounds = array<i64: 64, 64>}, {pipeline_mode = #tpu.pipeline_mode<synchronous>, transform_indices = @transform_5, window_bounds = array<i64: 1, 64>}, {pipeline_mode = #tpu.pipeline_mode<synchronous>, transform_indices = @transform_6, window_bounds = array<i64: 64, 64>}, {pipeline_mode = #tpu.pipeline_mode<synchronous>, transform_indices = @transform_7, window_bounds = array<i64: 1, 64>}, {pipeline_mode = #tpu.pipeline_mode<synchronous>, transform_indices = @transform_8, window_bounds = array<i64: 64, 128>}, {pipeline_mode = #tpu.pipeline_mode<synchronous>, transform_indices = @transform_9, window_bounds = array<i64: 1, 128>}, {pipeline_mode = #tpu.pipeline_mode<synchronous>, transform_indices = @transform_10, window_bounds = array<i64: 64, 64>}, {pipeline_mode = #tpu.pipeline_mode<synchronous>, transform_indices = @transform_11, window_bounds = array<i64: 1, 64>}, {pipeline_mode = #tpu.pipeline_mode<synchronous>, transform_indices = @transform_12, window_bounds = array<i64: 64, 256>}, {pipeline_mode = #tpu.pipeline_mode<synchronous>, transform_indices = @transform_13, window_bounds = array<i64: 1, 256>}, {pipeline_mode = #tpu.pipeline_mode<synchronous>, transform_indices = @transform_14, window_bounds = array<i64: 256, 64>}, {pipeline_mode = #tpu.pipeline_mode<synchronous>, transform_indices = @transform_15, window_bounds = array<i64: 1, 64>}, {pipeline_mode = #tpu.pipeline_mode<synchronous>, transform_indices = @transform_16, window_bounds = array<i64: 1, 64>}, {pipeline_mode = #tpu.pipeline_mode<synchronous>, transform_indices = @transform_17, window_bounds = array<i64: 1, 64>}, {pipeline_mode = #tpu.pipeline_mode<synchronous>, transform_indices = @transform_18, window_bounds = array<i64: 1, 64>}, {pipeline_mode = #tpu.pipeline_mode<synchronous>, transform_indices = @transform_19, window_bounds = array<i64: 1, 64>}, {pipeline_mode = #tpu.pipeline_mode<synchronous>, transform_indices = @transform_20, window_bounds = array<i64: 1, 64>}, {pipeline_mode = #tpu.pipeline_mode<synchronous>, transform_indices = @transform_21, window_bounds = array<i64: 1, 64>}, {transform_indices = @transform_22, window_bounds = array<i64: 1, 9, 64>}]} {
    %c0 = arith.constant 0 : index
    %c0_0 = arith.constant 0 : index
    %c0_1 = arith.constant 0 : index
    %0 = vector.load %arg1[%c0, %c0_0, %c0_1] : memref<1x9x64xf32, #tpu.memory_space<vmem>>, vector<1x9x64xf32>
    %1 = vector.shape_cast %0 : vector<1x9x64xf32> to vector<9x64xf32>
    %c0_2 = arith.constant 0 : index
    %c0_3 = arith.constant 0 : index
    %c0_4 = arith.constant 0 : index
    %2 = vector.load %arg2[%c0_2, %c0_3, %c0_4] : memref<1x12x64xf32, #tpu.memory_space<vmem>>, vector<1x12x64xf32>
    %3 = vector.shape_cast %2 : vector<1x12x64xf32> to vector<12x64xf32>
    %c0_5 = arith.constant 0 : index
    %c0_6 = arith.constant 0 : index
    %4 = vector.load %arg3[%c0_5, %c0_6] : memref<64x192xf32, #tpu.memory_space<vmem>>, vector<64x192xf32>
    %5 = arith.truncf %1 : vector<9x64xf32> to vector<9x64xbf16>
    %6 = arith.truncf %4 : vector<64x192xf32> to vector<64x192xbf16>
    %cst = arith.constant dense<0.000000e+00> : vector<9x192xf32>
    %7 = tpu.matmul %5, %6, %cst {dimension_numbers = #tpu.dot_dimension_numbers<[1], [0], [0], [1], [0, 0, 1, 1], [], []>} : vector<9x64xbf16>, vector<64x192xbf16>, vector<9x192xf32> -> vector<9x192xf32>
    %c0_7 = arith.constant 0 : index
    %c0_8 = arith.constant 0 : index
    %8 = vector.load %arg4[%c0_7, %c0_8] : memref<1x192xf32, #tpu.memory_space<vmem>>, vector<1x192xf32>
    %9 = vector.broadcast %8 : vector<1x192xf32> to vector<9x192xf32>
    %10 = arith.addf %7, %9 : vector<9x192xf32>
    %11 = vector.extract_strided_slice %10 {offsets = [0, 0], sizes = [9, 64], strides = [1, 1]} : vector<9x192xf32> to vector<9x64xf32>
    %12 = vector.extract_strided_slice %10 {offsets = [0, 64], sizes = [9, 64], strides = [1, 1]} : vector<9x192xf32> to vector<9x64xf32>
    %13 = vector.extract_strided_slice %10 {offsets = [0, 128], sizes = [9, 64], strides = [1, 1]} : vector<9x192xf32> to vector<9x64xf32>
    %cst_9 = arith.constant 1.250000e-01 : f32
    %14 = vector.broadcast %cst_9 : f32 to vector<9x64xf32>
    %15 = arith.mulf %11, %14 : vector<9x64xf32>
    %16 = arith.truncf %15 : vector<9x64xf32> to vector<9x64xbf16>
    %17 = arith.truncf %12 : vector<9x64xf32> to vector<9x64xbf16>
    %cst_10 = arith.constant dense<0.000000e+00> : vector<9x9xf32>
    %18 = tpu.matmul %16, %17, %cst_10 {dimension_numbers = #tpu.dot_dimension_numbers<[1], [1], [0], [0], [0, 0, 1, 0], [], []>} : vector<9x64xbf16>, vector<9x64xbf16>, vector<9x9xf32> -> vector<9x9xf32>
    %cst_11 = arith.constant dense<0xFF800000> : vector<9xf32>
    %19 = vector.multi_reduction <maximumf>, %18, %cst_11 [1] : vector<9x9xf32> to vector<9xf32>
    %20 = vector.shape_cast %19 : vector<9xf32> to vector<9x1xf32>
    %21 = vector.broadcast %20 : vector<9x1xf32> to vector<9x9xf32>
    %22 = arith.subf %18, %21 : vector<9x9xf32>
    %23 = math.exp %22 : vector<9x9xf32>
    %cst_12 = arith.constant dense<0.000000e+00> : vector<9xf32>
    %24 = vector.multi_reduction <add>, %23, %cst_12 [1] : vector<9x9xf32> to vector<9xf32>
    %25 = vector.shape_cast %24 : vector<9xf32> to vector<9x1xf32>
    %26 = tpu.reciprocal %25 {approx = true} : vector<9x1xf32> -> vector<9x1xf32>
    %27 = vector.broadcast %26 : vector<9x1xf32> to vector<9x9xf32>
    %28 = arith.mulf %23, %27 : vector<9x9xf32>
    %29 = arith.truncf %28 : vector<9x9xf32> to vector<9x9xbf16>
    %30 = arith.truncf %13 : vector<9x64xf32> to vector<9x64xbf16>
    %cst_13 = arith.constant dense<0.000000e+00> : vector<9x64xf32>
    %31 = tpu.matmul %29, %30, %cst_13 {dimension_numbers = #tpu.dot_dimension_numbers<[1], [0], [0], [1], [0, 0, 1, 1], [], []>} : vector<9x9xbf16>, vector<9x64xbf16>, vector<9x64xf32> -> vector<9x64xf32>
    %c0_14 = arith.constant 0 : index
    %c0_15 = arith.constant 0 : index
    %32 = vector.load %arg5[%c0_14, %c0_15] : memref<64x64xf32, #tpu.memory_space<vmem>>, vector<64x64xf32>
    %33 = arith.truncf %31 : vector<9x64xf32> to vector<9x64xbf16>
    %34 = arith.truncf %32 : vector<64x64xf32> to vector<64x64xbf16>
    %cst_16 = arith.constant dense<0.000000e+00> : vector<9x64xf32>
    %35 = tpu.matmul %33, %34, %cst_16 {dimension_numbers = #tpu.dot_dimension_numbers<[1], [0], [0], [1], [0, 0, 1, 1], [], []>} : vector<9x64xbf16>, vector<64x64xbf16>, vector<9x64xf32> -> vector<9x64xf32>
    %c0_17 = arith.constant 0 : index
    %c0_18 = arith.constant 0 : index
    %36 = vector.load %arg6[%c0_17, %c0_18] : memref<1x64xf32, #tpu.memory_space<vmem>>, vector<1x64xf32>
    %37 = vector.broadcast %36 : vector<1x64xf32> to vector<9x64xf32>
    %38 = arith.addf %35, %37 : vector<9x64xf32>
    %39 = arith.addf %1, %38 : vector<9x64xf32>
    %c0_19 = arith.constant 0 : index
    %c0_20 = arith.constant 0 : index
    %40 = vector.load %arg17[%c0_19, %c0_20] : memref<1x64xf32, #tpu.memory_space<vmem>>, vector<1x64xf32>
    %c0_21 = arith.constant 0 : index
    %c0_22 = arith.constant 0 : index
    %41 = vector.load %arg18[%c0_21, %c0_22] : memref<1x64xf32, #tpu.memory_space<vmem>>, vector<1x64xf32>
    %cst_23 = arith.constant dense<0.000000e+00> : vector<9xf32>
    %42 = vector.multi_reduction <add>, %39, %cst_23 [1] : vector<9x64xf32> to vector<9xf32>
    %43 = vector.shape_cast %42 : vector<9xf32> to vector<9x1xf32>
    %cst_24 = arith.constant 6.400000e+01 : f32
    %44 = vector.broadcast %cst_24 : f32 to vector<9x1xf32>
    %45 = arith.divf %43, %44 : vector<9x1xf32>
    %46 = vector.broadcast %45 : vector<9x1xf32> to vector<9x64xf32>
    %47 = arith.subf %39, %46 : vector<9x64xf32>
    %48 = arith.mulf %47, %47 : vector<9x64xf32>
    %cst_25 = arith.constant dense<0.000000e+00> : vector<9xf32>
    %49 = vector.multi_reduction <add>, %48, %cst_25 [1] : vector<9x64xf32> to vector<9xf32>
    %50 = vector.shape_cast %49 : vector<9xf32> to vector<9x1xf32>
    %cst_26 = arith.constant 6.400000e+01 : f32
    %51 = vector.broadcast %cst_26 : f32 to vector<9x1xf32>
    %52 = arith.divf %50, %51 : vector<9x1xf32>
    %53 = vector.broadcast %45 : vector<9x1xf32> to vector<9x64xf32>
    %54 = arith.subf %39, %53 : vector<9x64xf32>
    %cst_27 = arith.constant 9.99999974E-6 : f32
    %55 = vector.broadcast %cst_27 : f32 to vector<9x1xf32>
    %56 = arith.addf %52, %55 : vector<9x1xf32>
    %57 = math.rsqrt %56 : vector<9x1xf32>
    %58 = vector.broadcast %57 : vector<9x1xf32> to vector<9x64xf32>
    %59 = arith.mulf %54, %58 : vector<9x64xf32>
    %60 = vector.broadcast %40 : vector<1x64xf32> to vector<9x64xf32>
    %61 = arith.mulf %59, %60 : vector<9x64xf32>
    %62 = vector.broadcast %41 : vector<1x64xf32> to vector<9x64xf32>
    %63 = arith.addf %61, %62 : vector<9x64xf32>
    %c0_28 = arith.constant 0 : index
    %c0_29 = arith.constant 0 : index
    %64 = vector.load %arg7[%c0_28, %c0_29] : memref<64x64xf32, #tpu.memory_space<vmem>>, vector<64x64xf32>
    %65 = arith.truncf %63 : vector<9x64xf32> to vector<9x64xbf16>
    %66 = arith.truncf %64 : vector<64x64xf32> to vector<64x64xbf16>
    %cst_30 = arith.constant dense<0.000000e+00> : vector<9x64xf32>
    %67 = tpu.matmul %65, %66, %cst_30 {dimension_numbers = #tpu.dot_dimension_numbers<[1], [0], [0], [1], [0, 0, 1, 1], [], []>} : vector<9x64xbf16>, vector<64x64xbf16>, vector<9x64xf32> -> vector<9x64xf32>
    %c0_31 = arith.constant 0 : index
    %c0_32 = arith.constant 0 : index
    %68 = vector.load %arg8[%c0_31, %c0_32] : memref<1x64xf32, #tpu.memory_space<vmem>>, vector<1x64xf32>
    %69 = vector.broadcast %68 : vector<1x64xf32> to vector<9x64xf32>
    %70 = arith.addf %67, %69 : vector<9x64xf32>
    %c0_33 = arith.constant 0 : index
    %c0_34 = arith.constant 0 : index
    %71 = vector.load %arg9[%c0_33, %c0_34] : memref<64x128xf32, #tpu.memory_space<vmem>>, vector<64x128xf32>
    %72 = arith.truncf %3 : vector<12x64xf32> to vector<12x64xbf16>
    %73 = arith.truncf %71 : vector<64x128xf32> to vector<64x128xbf16>
    %cst_35 = arith.constant dense<0.000000e+00> : vector<12x128xf32>
    %74 = tpu.matmul %72, %73, %cst_35 {dimension_numbers = #tpu.dot_dimension_numbers<[1], [0], [0], [1], [0, 0, 1, 1], [], []>} : vector<12x64xbf16>, vector<64x128xbf16>, vector<12x128xf32> -> vector<12x128xf32>
    %c0_36 = arith.constant 0 : index
    %c0_37 = arith.constant 0 : index
    %75 = vector.load %arg10[%c0_36, %c0_37] : memref<1x128xf32, #tpu.memory_space<vmem>>, vector<1x128xf32>
    %76 = vector.broadcast %75 : vector<1x128xf32> to vector<12x128xf32>
    %77 = arith.addf %74, %76 : vector<12x128xf32>
    %78 = vector.extract_strided_slice %77 {offsets = [0, 0], sizes = [12, 64], strides = [1, 1]} : vector<12x128xf32> to vector<12x64xf32>
    %79 = vector.extract_strided_slice %77 {offsets = [0, 64], sizes = [12, 64], strides = [1, 1]} : vector<12x128xf32> to vector<12x64xf32>
    %cst_38 = arith.constant 1.250000e-01 : f32
    %80 = vector.broadcast %cst_38 : f32 to vector<9x64xf32>
    %81 = arith.mulf %70, %80 : vector<9x64xf32>
    %82 = arith.truncf %81 : vector<9x64xf32> to vector<9x64xbf16>
    %83 = arith.truncf %78 : vector<12x64xf32> to vector<12x64xbf16>
    %cst_39 = arith.constant dense<0.000000e+00> : vector<9x12xf32>
    %84 = tpu.matmul %82, %83, %cst_39 {dimension_numbers = #tpu.dot_dimension_numbers<[1], [1], [0], [0], [0, 0, 1, 0], [], []>} : vector<9x64xbf16>, vector<12x64xbf16>, vector<9x12xf32> -> vector<9x12xf32>
    %cst_40 = arith.constant dense<0xFF800000> : vector<9xf32>
    %85 = vector.multi_reduction <maximumf>, %84, %cst_40 [1] : vector<9x12xf32> to vector<9xf32>
    %86 = vector.shape_cast %85 : vector<9xf32> to vector<9x1xf32>
    %87 = vector.broadcast %86 : vector<9x1xf32> to vector<9x12xf32>
    %88 = arith.subf %84, %87 : vector<9x12xf32>
    %89 = math.exp %88 : vector<9x12xf32>
    %cst_41 = arith.constant dense<0.000000e+00> : vector<9xf32>
    %90 = vector.multi_reduction <add>, %89, %cst_41 [1] : vector<9x12xf32> to vector<9xf32>
    %91 = vector.shape_cast %90 : vector<9xf32> to vector<9x1xf32>
    %92 = tpu.reciprocal %91 {approx = true} : vector<9x1xf32> -> vector<9x1xf32>
    %93 = vector.broadcast %92 : vector<9x1xf32> to vector<9x12xf32>
    %94 = arith.mulf %89, %93 : vector<9x12xf32>
    %95 = arith.truncf %94 : vector<9x12xf32> to vector<9x12xbf16>
    %96 = arith.truncf %79 : vector<12x64xf32> to vector<12x64xbf16>
    %cst_42 = arith.constant dense<0.000000e+00> : vector<9x64xf32>
    %97 = tpu.matmul %95, %96, %cst_42 {dimension_numbers = #tpu.dot_dimension_numbers<[1], [0], [0], [1], [0, 0, 1, 1], [], []>} : vector<9x12xbf16>, vector<12x64xbf16>, vector<9x64xf32> -> vector<9x64xf32>
    %c0_43 = arith.constant 0 : index
    %c0_44 = arith.constant 0 : index
    %98 = vector.load %arg11[%c0_43, %c0_44] : memref<64x64xf32, #tpu.memory_space<vmem>>, vector<64x64xf32>
    %99 = arith.truncf %97 : vector<9x64xf32> to vector<9x64xbf16>
    %100 = arith.truncf %98 : vector<64x64xf32> to vector<64x64xbf16>
    %cst_45 = arith.constant dense<0.000000e+00> : vector<9x64xf32>
    %101 = tpu.matmul %99, %100, %cst_45 {dimension_numbers = #tpu.dot_dimension_numbers<[1], [0], [0], [1], [0, 0, 1, 1], [], []>} : vector<9x64xbf16>, vector<64x64xbf16>, vector<9x64xf32> -> vector<9x64xf32>
    %c0_46 = arith.constant 0 : index
    %c0_47 = arith.constant 0 : index
    %102 = vector.load %arg12[%c0_46, %c0_47] : memref<1x64xf32, #tpu.memory_space<vmem>>, vector<1x64xf32>
    %103 = vector.broadcast %102 : vector<1x64xf32> to vector<9x64xf32>
    %104 = arith.addf %101, %103 : vector<9x64xf32>
    %105 = arith.addf %63, %104 : vector<9x64xf32>
    %c0_48 = arith.constant 0 : index
    %c0_49 = arith.constant 0 : index
    %106 = vector.load %arg19[%c0_48, %c0_49] : memref<1x64xf32, #tpu.memory_space<vmem>>, vector<1x64xf32>
    %c0_50 = arith.constant 0 : index
    %c0_51 = arith.constant 0 : index
    %107 = vector.load %arg20[%c0_50, %c0_51] : memref<1x64xf32, #tpu.memory_space<vmem>>, vector<1x64xf32>
    %cst_52 = arith.constant dense<0.000000e+00> : vector<9xf32>
    %108 = vector.multi_reduction <add>, %105, %cst_52 [1] : vector<9x64xf32> to vector<9xf32>
    %109 = vector.shape_cast %108 : vector<9xf32> to vector<9x1xf32>
    %cst_53 = arith.constant 6.400000e+01 : f32
    %110 = vector.broadcast %cst_53 : f32 to vector<9x1xf32>
    %111 = arith.divf %109, %110 : vector<9x1xf32>
    %112 = vector.broadcast %111 : vector<9x1xf32> to vector<9x64xf32>
    %113 = arith.subf %105, %112 : vector<9x64xf32>
    %114 = arith.mulf %113, %113 : vector<9x64xf32>
    %cst_54 = arith.constant dense<0.000000e+00> : vector<9xf32>
    %115 = vector.multi_reduction <add>, %114, %cst_54 [1] : vector<9x64xf32> to vector<9xf32>
    %116 = vector.shape_cast %115 : vector<9xf32> to vector<9x1xf32>
    %cst_55 = arith.constant 6.400000e+01 : f32
    %117 = vector.broadcast %cst_55 : f32 to vector<9x1xf32>
    %118 = arith.divf %116, %117 : vector<9x1xf32>
    %119 = vector.broadcast %111 : vector<9x1xf32> to vector<9x64xf32>
    %120 = arith.subf %105, %119 : vector<9x64xf32>
    %cst_56 = arith.constant 9.99999974E-6 : f32
    %121 = vector.broadcast %cst_56 : f32 to vector<9x1xf32>
    %122 = arith.addf %118, %121 : vector<9x1xf32>
    %123 = math.rsqrt %122 : vector<9x1xf32>
    %124 = vector.broadcast %123 : vector<9x1xf32> to vector<9x64xf32>
    %125 = arith.mulf %120, %124 : vector<9x64xf32>
    %126 = vector.broadcast %106 : vector<1x64xf32> to vector<9x64xf32>
    %127 = arith.mulf %125, %126 : vector<9x64xf32>
    %128 = vector.broadcast %107 : vector<1x64xf32> to vector<9x64xf32>
    %129 = arith.addf %127, %128 : vector<9x64xf32>
    %c0_57 = arith.constant 0 : index
    %c0_58 = arith.constant 0 : index
    %130 = vector.load %arg13[%c0_57, %c0_58] : memref<64x256xf32, #tpu.memory_space<vmem>>, vector<64x256xf32>
    %131 = arith.truncf %129 : vector<9x64xf32> to vector<9x64xbf16>
    %132 = arith.truncf %130 : vector<64x256xf32> to vector<64x256xbf16>
    %cst_59 = arith.constant dense<0.000000e+00> : vector<9x256xf32>
    %133 = tpu.matmul %131, %132, %cst_59 {dimension_numbers = #tpu.dot_dimension_numbers<[1], [0], [0], [1], [0, 0, 1, 1], [], []>} : vector<9x64xbf16>, vector<64x256xbf16>, vector<9x256xf32> -> vector<9x256xf32>
    %c0_60 = arith.constant 0 : index
    %c0_61 = arith.constant 0 : index
    %134 = vector.load %arg14[%c0_60, %c0_61] : memref<1x256xf32, #tpu.memory_space<vmem>>, vector<1x256xf32>
    %135 = vector.broadcast %134 : vector<1x256xf32> to vector<9x256xf32>
    %136 = arith.addf %133, %135 : vector<9x256xf32>
    %cst_62 = arith.constant 0.000000e+00 : f32
    %137 = vector.broadcast %cst_62 : f32 to vector<9x256xf32>
    %138 = arith.maximumf %136, %137 : vector<9x256xf32>
    %c0_63 = arith.constant 0 : index
    %c0_64 = arith.constant 0 : index
    %139 = vector.load %arg15[%c0_63, %c0_64] : memref<256x64xf32, #tpu.memory_space<vmem>>, vector<256x64xf32>
    %140 = arith.truncf %138 : vector<9x256xf32> to vector<9x256xbf16>
    %141 = arith.truncf %139 : vector<256x64xf32> to vector<256x64xbf16>
    %cst_65 = arith.constant dense<0.000000e+00> : vector<9x64xf32>
    %142 = tpu.matmul %140, %141, %cst_65 {dimension_numbers = #tpu.dot_dimension_numbers<[1], [0], [0], [1], [0, 0, 1, 1], [], []>} : vector<9x256xbf16>, vector<256x64xbf16>, vector<9x64xf32> -> vector<9x64xf32>
    %c0_66 = arith.constant 0 : index
    %c0_67 = arith.constant 0 : index
    %143 = vector.load %arg16[%c0_66, %c0_67] : memref<1x64xf32, #tpu.memory_space<vmem>>, vector<1x64xf32>
    %144 = vector.broadcast %143 : vector<1x64xf32> to vector<9x64xf32>
    %145 = arith.addf %142, %144 : vector<9x64xf32>
    %146 = arith.addf %129, %145 : vector<9x64xf32>
    %c0_68 = arith.constant 0 : index
    %c0_69 = arith.constant 0 : index
    %147 = vector.load %arg21[%c0_68, %c0_69] : memref<1x64xf32, #tpu.memory_space<vmem>>, vector<1x64xf32>
    %c0_70 = arith.constant 0 : index
    %c0_71 = arith.constant 0 : index
    %148 = vector.load %arg22[%c0_70, %c0_71] : memref<1x64xf32, #tpu.memory_space<vmem>>, vector<1x64xf32>
    %cst_72 = arith.constant dense<0.000000e+00> : vector<9xf32>
    %149 = vector.multi_reduction <add>, %146, %cst_72 [1] : vector<9x64xf32> to vector<9xf32>
    %150 = vector.shape_cast %149 : vector<9xf32> to vector<9x1xf32>
    %cst_73 = arith.constant 6.400000e+01 : f32
    %151 = vector.broadcast %cst_73 : f32 to vector<9x1xf32>
    %152 = arith.divf %150, %151 : vector<9x1xf32>
    %153 = vector.broadcast %152 : vector<9x1xf32> to vector<9x64xf32>
    %154 = arith.subf %146, %153 : vector<9x64xf32>
    %155 = arith.mulf %154, %154 : vector<9x64xf32>
    %cst_74 = arith.constant dense<0.000000e+00> : vector<9xf32>
    %156 = vector.multi_reduction <add>, %155, %cst_74 [1] : vector<9x64xf32> to vector<9xf32>
    %157 = vector.shape_cast %156 : vector<9xf32> to vector<9x1xf32>
    %cst_75 = arith.constant 6.400000e+01 : f32
    %158 = vector.broadcast %cst_75 : f32 to vector<9x1xf32>
    %159 = arith.divf %157, %158 : vector<9x1xf32>
    %160 = vector.broadcast %152 : vector<9x1xf32> to vector<9x64xf32>
    %161 = arith.subf %146, %160 : vector<9x64xf32>
    %cst_76 = arith.constant 9.99999974E-6 : f32
    %162 = vector.broadcast %cst_76 : f32 to vector<9x1xf32>
    %163 = arith.addf %159, %162 : vector<9x1xf32>
    %164 = math.rsqrt %163 : vector<9x1xf32>
    %165 = vector.broadcast %164 : vector<9x1xf32> to vector<9x64xf32>
    %166 = arith.mulf %161, %165 : vector<9x64xf32>
    %167 = vector.broadcast %147 : vector<1x64xf32> to vector<9x64xf32>
    %168 = arith.mulf %166, %167 : vector<9x64xf32>
    %169 = vector.broadcast %148 : vector<1x64xf32> to vector<9x64xf32>
    %170 = arith.addf %168, %169 : vector<9x64xf32>
    %c0_77 = arith.constant 0 : index
    %c0_78 = arith.constant 0 : index
    %c0_79 = arith.constant 0 : index
    %171 = vector.load %arg23[%c0_77, %c0_78, %c0_79] : memref<1x9x64xf32, #tpu.memory_space<vmem>>, vector<1x9x64xf32>
    %172 = vector.shape_cast %171 : vector<1x9x64xf32> to vector<9x64xf32>
    %173 = vector.shape_cast %170 : vector<9x64xf32> to vector<1x9x64xf32>
    tpu.vector_store %arg23[%c0_77, %c0_78, %c0_79], %173 {strides = array<i32>} : memref<1x9x64xf32, #tpu.memory_space<vmem>>, vector<1x9x64xf32>,
    return
  }
  func.func @transform_0(%arg0: i32) -> (i32, i32, i32) {
    %c0_i32 = arith.constant 0 : i32
    %c0_i32_0 = arith.constant 0 : i32
    %c0_i32_1 = arith.constant 0 : i32
    return %arg0, %c0_i32, %c0_i32_0 : i32, i32, i32
  }
  func.func @transform_1(%arg0: i32) -> (i32, i32, i32) {
    %c0_i32 = arith.constant 0 : i32
    %c0_i32_0 = arith.constant 0 : i32
    %c0_i32_1 = arith.constant 0 : i32
    return %arg0, %c0_i32, %c0_i32_0 : i32, i32, i32
  }
  func.func @transform_2(%arg0: i32) -> (i32, i32) {
    %c0_i32 = arith.constant 0 : i32
    %c0_i32_0 = arith.constant 0 : i32
    %c0_i32_1 = arith.constant 0 : i32
    return %c0_i32, %c0_i32_0 : i32, i32
  }
  func.func @transform_3(%arg0: i32) -> (i32, i32) {
    %c0_i32 = arith.constant 0 : i32
    %c0_i32_0 = arith.constant 0 : i32
    %c0_i32_1 = arith.constant 0 : i32
    return %c0_i32, %c0_i32_0 : i32, i32
  }
  func.func @transform_4(%arg0: i32) -> (i32, i32) {
    %c0_i32 = arith.constant 0 : i32
    %c0_i32_0 = arith.constant 0 : i32
    %c0_i32_1 = arith.constant 0 : i32
    return %c0_i32, %c0_i32_0 : i32, i32
  }
  func.func @transform_5(%arg0: i32) -> (i32, i32) {
    %c0_i32 = arith.constant 0 : i32
    %c0_i32_0 = arith.constant 0 : i32
    %c0_i32_1 = arith.constant 0 : i32
    return %c0_i32, %c0_i32_0 : i32, i32
  }
  func.func @transform_6(%arg0: i32) -> (i32, i32) {
    %c0_i32 = arith.constant 0 : i32
    %c0_i32_0 = arith.constant 0 : i32
    %c0_i32_1 = arith.constant 0 : i32
    return %c0_i32, %c0_i32_0 : i32, i32
  }
  func.func @transform_7(%arg0: i32) -> (i32, i32) {
    %c0_i32 = arith.constant 0 : i32
    %c0_i32_0 = arith.constant 0 : i32
    %c0_i32_1 = arith.constant 0 : i32
    return %c0_i32, %c0_i32_0 : i32, i32
  }
  func.func @transform_8(%arg0: i32) -> (i32, i32) {
    %c0_i32 = arith.constant 0 : i32
    %c0_i32_0 = arith.constant 0 : i32
    %c0_i32_1 = arith.constant 0 : i32
    return %c0_i32, %c0_i32_0 : i32, i32
  }
  func.func @transform_9(%arg0: i32) -> (i32, i32) {
    %c0_i32 = arith.constant 0 : i32
    %c0_i32_0 = arith.constant 0 : i32
    %c0_i32_1 = arith.constant 0 : i32
    return %c0_i32, %c0_i32_0 : i32, i32
  }
  func.func @transform_10(%arg0: i32) -> (i32, i32) {
    %c0_i32 = arith.constant 0 : i32
    %c0_i32_0 = arith.constant 0 : i32
    %c0_i32_1 = arith.constant 0 : i32
    return %c0_i32, %c0_i32_0 : i32, i32
  }
  func.func @transform_11(%arg0: i32) -> (i32, i32) {
    %c0_i32 = arith.constant 0 : i32
    %c0_i32_0 = arith.constant 0 : i32
    %c0_i32_1 = arith.constant 0 : i32
    return %c0_i32, %c0_i32_0 : i32, i32
  }
  func.func @transform_12(%arg0: i32) -> (i32, i32) {
    %c0_i32 = arith.constant 0 : i32
    %c0_i32_0 = arith.constant 0 : i32
    %c0_i32_1 = arith.constant 0 : i32
    return %c0_i32, %c0_i32_0 : i32, i32
  }
  func.func @transform_13(%arg0: i32) -> (i32, i32) {
    %c0_i32 = arith.constant 0 : i32
    %c0_i32_0 = arith.constant 0 : i32
    %c0_i32_1 = arith.constant 0 : i32
    return %c0_i32, %c0_i32_0 : i32, i32
  }
  func.func @transform_14(%arg0: i32) -> (i32, i32) {
    %c0_i32 = arith.constant 0 : i32
    %c0_i32_0 = arith.constant 0 : i32
    %c0_i32_1 = arith.constant 0 : i32
    return %c0_i32, %c0_i32_0 : i32, i32
  }
  func.func @transform_15(%arg0: i32) -> (i32, i32) {
    %c0_i32 = arith.constant 0 : i32
    %c0_i32_0 = arith.constant 0 : i32
    %c0_i32_1 = arith.constant 0 : i32
    return %c0_i32, %c0_i32_0 : i32, i32
  }
  func.func @transform_16(%arg0: i32) -> (i32, i32) {
    %c0_i32 = arith.constant 0 : i32
    %c0_i32_0 = arith.constant 0 : i32
    %c0_i32_1 = arith.constant 0 : i32
    return %c0_i32, %c0_i32_0 : i32, i32
  }
  func.func @transform_17(%arg0: i32) -> (i32, i32) {
    %c0_i32 = arith.constant 0 : i32
    %c0_i32_0 = arith.constant 0 : i32
    %c0_i32_1 = arith.constant 0 : i32
    return %c0_i32, %c0_i32_0 : i32, i32
  }
  func.func @transform_18(%arg0: i32) -> (i32, i32) {
    %c0_i32 = arith.constant 0 : i32
    %c0_i32_0 = arith.constant 0 : i32
    %c0_i32_1 = arith.constant 0 : i32
    return %c0_i32, %c0_i32_0 : i32, i32
  }
  func.func @transform_19(%arg0: i32) -> (i32, i32) {
    %c0_i32 = arith.constant 0 : i32
    %c0_i32_0 = arith.constant 0 : i32
    %c0_i32_1 = arith.constant 0 : i32
    return %c0_i32, %c0_i32_0 : i32, i32
  }
  func.func @transform_20(%arg0: i32) -> (i32, i32) {
    %c0_i32 = arith.constant 0 : i32
    %c0_i32_0 = arith.constant 0 : i32
    %c0_i32_1 = arith.constant 0 : i32
    return %c0_i32, %c0_i32_0 : i32, i32
  }
  func.func @transform_21(%arg0: i32) -> (i32, i32) {
    %c0_i32 = arith.constant 0 : i32
    %c0_i32_0 = arith.constant 0 : i32
    %c0_i32_1 = arith.constant 0 : i32
    return %c0_i32, %c0_i32_0 : i32, i32
  }
  func.func @transform_22(%arg0: i32) -> (i32, i32, i32) {
    %c0_i32 = arith.constant 0 : i32
    %c0_i32_0 = arith.constant 0 : i32
    %c0_i32_1 = arith.constant 0 : i32
    return %arg0, %c0_i32, %c0_i32_0 : i32, i32, i32
  }
}

</mosaic_0001>

<llo_original>
// kernel: tpu_custom_call.1
$region0: #{tpu_custom_call.1}
  #allocation0 [shape = 'u32[]', space=smem, size = 0x4, offset = 0x4, fixed_abs, tag = 'smem constant byte address 0x4 - core index']
  #allocation1 [shape = 'u32[144,128]{1,0:T(1,128)}', space=vmem, size = 0x12000, scoped, tag = 'internal scratch']
  %s0 = inlined_call_operand.vmem [shape: f32[2,9,64], index: 0, kind: input, shape index: {}]
  %s1 = inlined_call_operand.vmem [shape: f32[2,12,64], index: 1, kind: input, shape index: {}]
  %s2 = inlined_call_operand.vmem [shape: f32[64,192], index: 2, kind: input, shape index: {}]
  %s3 = inlined_call_operand.vmem [shape: f32[1,192], index: 3, kind: input, shape index: {}]
  %s4 = inlined_call_operand.vmem [shape: f32[64,64], index: 4, kind: input, shape index: {}]
  %s5 = inlined_call_operand.vmem [shape: f32[1,64], index: 5, kind: input, shape index: {}]
  %s6 = inlined_call_operand.vmem [shape: f32[64,64], index: 6, kind: input, shape index: {}]
  %s7 = inlined_call_operand.vmem [shape: f32[1,64], index: 7, kind: input, shape index: {}]
  %s8 = inlined_call_operand.hbm [shape: f32[64,128], index: 8, kind: input, shape index: {}]
  %s9 = inlined_call_operand.vmem [shape: f32[1,128], index: 9, kind: input, shape index: {}]
  %s10 = inlined_call_operand.hbm [shape: f32[64,64], index: 10, kind: input, shape index: {}]
  %s11 = inlined_call_operand.vmem [shape: f32[1,64], index: 11, kind: input, shape index: {}]
  %s12 = inlined_call_operand.vmem [shape: f32[64,256], index: 12, kind: input, shape index: {}]
  %s13 = inlined_call_operand.vmem [shape: f32[1,256], index: 13, kind: input, shape index: {}]
  %s14 = inlined_call_operand.vmem [shape: f32[256,64], index: 14, kind: input, shape index: {}]
  %s15 = inlined_call_operand.vmem [shape: f32[1,64], index: 15, kind: input, shape index: {}]
  %s16 = inlined_call_operand.vmem [shape: f32[1,64], index: 16, kind: input, shape index: {}]
  %s17 = inlined_call_operand.vmem [shape: f32[1,64], index: 17, kind: input, shape index: {}]
  %s18 = inlined_call_operand.vmem [shape: f32[1,64], index: 18, kind: input, shape index: {}]
  %s19 = inlined_call_operand.vmem [shape: f32[1,64], index: 19, kind: input, shape index: {}]
  %s20 = inlined_call_operand.vmem [shape: f32[1,64], index: 20, kind: input, shape index: {}]
  %s21 = inlined_call_operand.vmem [shape: f32[1,64], index: 21, kind: input, shape index: {}]
  %s22 = inlined_call_operand.vmem [shape: f32[2,9,64], index: 22, kind: output, shape index: {}]
  %s23 = sld [smem:[#allocation0]]
  $region129: #{tpu_custom_call.1} parent=0
    _
  %s25 = ssub.s32 1, %s23
  %s26 = scalar_select 0, %s25, %s23
  $region1: #{tpu_custom_call.1} parent=0
    #allocation2 [shape = 'u8[32768]{0}', space=vmem, size = 0x8000, scoped, tag = 'input window, operand 8, single buffered']
    #allocation3 [shape = 's32[2]{0}', space=sflag, size = 0x8, scoped, tag = 'scoped memory for tpu_custom_call.1']
    #allocation4 [shape = 'u8[32768]{0}', space=vmem, size = 0x8000, scoped, tag = 'input window, operand 10, single buffered']
    #allocation5 [shape = 's32[1]{0}', space=sflag, size = 0x4, scoped, tag = 'scoped memory for tpu_custom_call.1']
    %27 = vsyncpa [#allocation3], 0
    %28 = vsyncpa [#allocation5], 0
    loop: start=0, step=1, limit=4
    $region2: #{tpu_custom_call.1} parent=1 // loop_pre_header
      _
    $region3: #{tpu_custom_call.1} parent=1 // loop_header
      %s30 = sphi 0, %s34
      %p31 = scmp.ge.s32.totalorder %s30, 4
      %s40 = sphi 0, %s42
      %s43 = sphi 0, %s40
      %s44 = sphi 0, %s43
      %s60 = sphi 0, %s44
      %s66 = sphi 0, %s68
      %s69 = sphi 0, %s66
      %s70 = sphi 0, %s69
      %s86 = sphi 0, %s70
      %s90 = sphi 0, %s90
      %s92 = sphi 0, %s90
      %s93 = sphi 0, %s92
      %s107 = sphi 0, %s93
      %s111 = sphi 0, %s111
      %s113 = sphi 0, %s111
      %s114 = sphi 0, %s113
      %s128 = sphi 0, %s114
      %s132 = sphi 0, %s132
      %s134 = sphi 0, %s132
      %s135 = sphi 0, %s134
      %s149 = sphi 0, %s135
      %s153 = sphi 0, %s153
      %s155 = sphi 0, %s153
      %s156 = sphi 0, %s155
      %s170 = sphi 0, %s156
      %s174 = sphi 0, %s174
      %s176 = sphi 0, %s174
      %s177 = sphi 0, %s176
      %s191 = sphi 0, %s177
      %s195 = sphi 0, %s195
      %s197 = sphi 0, %s195
      %s198 = sphi 0, %s197
      %s212 = sphi 0, %s198
      %s216 = sphi 0, %s216
      %s218 = sphi 0, %s216
      %s219 = sphi 0, %s218
      %s233 = sphi 0, %s219
      %s237 = sphi 0, %s237
      %s239 = sphi 0, %s237
      %s240 = sphi 0, %s239
      %s254 = sphi 0, %s240
      %s258 = sphi 0, %s258
      %s260 = sphi 0, %s258
      %s261 = sphi 0, %s260
      %s275 = sphi 0, %s261
      %s279 = sphi 0, %s279
      %s281 = sphi 0, %s279
      %s282 = sphi 0, %s281
      %s296 = sphi 0, %s282
      %s300 = sphi 0, %s300
      %s302 = sphi 0, %s300
      %s303 = sphi 0, %s302
      %s317 = sphi 0, %s303
      %s321 = sphi 0, %s321
      %s323 = sphi 0, %s321
      %s324 = sphi 0, %s323
      %s338 = sphi 0, %s324
      %s342 = sphi 0, %s342
      %s344 = sphi 0, %s342
      %s345 = sphi 0, %s344
      %s359 = sphi 0, %s345
      %s363 = sphi 0, %s363
      %s365 = sphi 0, %s363
      %s366 = sphi 0, %s365
      %s380 = sphi 0, %s366
      %s384 = sphi 0, %s384
      %s386 = sphi 0, %s384
      %s387 = sphi 0, %s386
      %s401 = sphi 0, %s387
      %s405 = sphi 0, %s405
      %s407 = sphi 0, %s405
      %s408 = sphi 0, %s407
      %s422 = sphi 0, %s408
      %s426 = sphi 0, %s426
      %s428 = sphi 0, %s426
      %s429 = sphi 0, %s428
      %s443 = sphi 0, %s429
      %s447 = sphi 0, %s447
      %s449 = sphi 0, %s447
      %s450 = sphi 0, %s449
      %s464 = sphi 0, %s450
      %s468 = sphi 0, %s468
      %s470 = sphi 0, %s468
      %s471 = sphi 0, %s470
      %s485 = sphi 0, %s471
      %s489 = sphi 0, %s489
      %s491 = sphi 0, %s489
      %s492 = sphi 0, %s491
      %s506 = sphi 0, %s492
      %s512 = sphi 0, %s514
      %s515 = sphi 0, %s512
      %s516 = sphi 0, %s515
      %s532 = sphi 0, %s516
    $region4: #{tpu_custom_call.1} parent=1 // loop_header_branch
      %33 = sbr.rel (%p31) target = $region8
    $region5: #{tpu_custom_call.1} parent=1 // loop_body
      %s35 = ssub.s32 %s30, 1
      %s36 = ssub.s32 %s30, 2
      %s37 = sadd.s32 %s30, 1
      %s38 = ssub.s32 %s30, %s37
      %p39 = scmp.eq.s32.totalorder %s38, 0
      %s41 = sadd.s32 %s40, 1
      %s42 = scalar_select %p39, %s40, %s41
      %p45 = pneg %p39
      %p46 = scmp.eq.s32.totalorder %s30, 1
      %p47 = por %p45, %p46
      %p48 = scmp.ne.s32.totalorder %s40, %s43
      %p49 = scmp.eq.s32.totalorder %s30, 0
      %p50 = por %p48, %p49
      %p51 = scmp.ne.s32.totalorder %s40, %s43
      %p52 = scmp.eq.s32.totalorder %s35, 1
      %p53 = por %p51, %p52
      %p54 = scmp.ne.s32.totalorder %s43, %s44
      %p55 = scmp.eq.s32.totalorder %s35, 0
      %p56 = por %p54, %p55
      %p57 = scmp.ne.s32.totalorder %s43, %s44
      %p58 = scmp.eq.s32.totalorder %s36, 1
      %p59 = por %p57, %p58
      %p61 = scmp.ne.s32.totalorder %s44, %s60
      %p62 = scmp.eq.s32.totalorder %s36, 0
      %p63 = por %p61, %p62
      %s64 = ssub.s32 %s30, %s37
      %p65 = scmp.eq.s32.totalorder %s64, 0
      %s67 = sadd.s32 %s66, 1
      %s68 = scalar_select %p65, %s66, %s67
      %p71 = pneg %p65
      %p72 = scmp.eq.s32.totalorder %s30, 1
      %p73 = por %p71, %p72
      %p74 = scmp.ne.s32.totalorder %s66, %s69
      %p75 = scmp.eq.s32.totalorder %s30, 0
      %p76 = por %p74, %p75
      %p77 = scmp.ne.s32.totalorder %s66, %s69
      %p78 = scmp.eq.s32.totalorder %s35, 1
      %p79 = por %p77, %p78
      %p80 = scmp.ne.s32.totalorder %s69, %s70
      %p81 = scmp.eq.s32.totalorder %s35, 0
      %p82 = por %p80, %p81
      %p83 = scmp.ne.s32.totalorder %s69, %s70
      %p84 = scmp.eq.s32.totalorder %s36, 1
      %p85 = por %p83, %p84
      %p87 = scmp.ne.s32.totalorder %s70, %s86
      %p88 = scmp.eq.s32.totalorder %s36, 0
      %p89 = por %p87, %p88
      %s91 = sadd.s32 %s90, 1
      %p94 = scmp.eq.s32.totalorder %s30, 1
      %p95 = scmp.ne.s32.totalorder %s90, %s92
      %p96 = scmp.eq.s32.totalorder %s30, 0
      %p97 = por %p95, %p96
      %p98 = scmp.ne.s32.totalorder %s90, %s92
      %p99 = scmp.eq.s32.totalorder %s35, 1
      %p100 = por %p98, %p99
      %p101 = scmp.ne.s32.totalorder %s92, %s93
      %p102 = scmp.eq.s32.totalorder %s35, 0
      %p103 = por %p101, %p102
      %p104 = scmp.ne.s32.totalorder %s92, %s93
      %p105 = scmp.eq.s32.totalorder %s36, 1
      %p106 = por %p104, %p105
      %p108 = scmp.ne.s32.totalorder %s93, %s107
      %p109 = scmp.eq.s32.totalorder %s36, 0
      %p110 = por %p108, %p109
      %s112 = sadd.s32 %s111, 1
      %p115 = scmp.eq.s32.totalorder %s30, 1
      %p116 = scmp.ne.s32.totalorder %s111, %s113
      %p117 = scmp.eq.s32.totalorder %s30, 0
      %p118 = por %p116, %p117
      %p119 = scmp.ne.s32.totalorder %s111, %s113
      %p120 = scmp.eq.s32.totalorder %s35, 1
      %p121 = por %p119, %p120
      %p122 = scmp.ne.s32.totalorder %s113, %s114
      %p123 = scmp.eq.s32.totalorder %s35, 0
      %p124 = por %p122, %p123
      %p125 = scmp.ne.s32.totalorder %s113, %s114
      %p126 = scmp.eq.s32.totalorder %s36, 1
      %p127 = por %p125, %p126
      %p129 = scmp.ne.s32.totalorder %s114, %s128
      %p130 = scmp.eq.s32.totalorder %s36, 0
      %p131 = por %p129, %p130
      %s133 = sadd.s32 %s132, 1
      %p136 = scmp.eq.s32.totalorder %s30, 1
      %p137 = scmp.ne.s32.totalorder %s132, %s134
      %p138 = scmp.eq.s32.totalorder %s30, 0
      %p139 = por %p137, %p138
      %p140 = scmp.ne.s32.totalorder %s132, %s134
      %p141 = scmp.eq.s32.totalorder %s35, 1
      %p142 = por %p140, %p141
      %p143 = scmp.ne.s32.totalorder %s134, %s135
      %p144 = scmp.eq.s32.totalorder %s35, 0
      %p145 = por %p143, %p144
      %p146 = scmp.ne.s32.totalorder %s134, %s135
      %p147 = scmp.eq.s32.totalorder %s36, 1
      %p148 = por %p146, %p147
      %p150 = scmp.ne.s32.totalorder %s135, %s149
      %p151 = scmp.eq.s32.totalorder %s36, 0
      %p152 = por %p150, %p151
      %s154 = sadd.s32 %s153, 1
      %p157 = scmp.eq.s32.totalorder %s30, 1
      %p158 = scmp.ne.s32.totalorder %s153, %s155
      %p159 = scmp.eq.s32.totalorder %s30, 0
      %p160 = por %p158, %p159
      %p161 = scmp.ne.s32.totalorder %s153, %s155
      %p162 = scmp.eq.s32.totalorder %s35, 1
      %p163 = por %p161, %p162
      %p164 = scmp.ne.s32.totalorder %s155, %s156
      %p165 = scmp.eq.s32.totalorder %s35, 0
      %p166 = por %p164, %p165
      %p167 = scmp.ne.s32.totalorder %s155, %s156
      %p168 = scmp.eq.s32.totalorder %s36, 1
      %p169 = por %p167, %p168
      %p171 = scmp.ne.s32.totalorder %s156, %s170
      %p172 = scmp.eq.s32.totalorder %s36, 0
      %p173 = por %p171, %p172
      %s175 = sadd.s32 %s174, 1
      %p178 = scmp.eq.s32.totalorder %s30, 1
      %p179 = scmp.ne.s32.totalorder %s174, %s176
      %p180 = scmp.eq.s32.totalorder %s30, 0
      %p181 = por %p179, %p180
      %p182 = scmp.ne.s32.totalorder %s174, %s176
      %p183 = scmp.eq.s32.totalorder %s35, 1
      %p184 = por %p182, %p183
      %p185 = scmp.ne.s32.totalorder %s176, %s177
      %p186 = scmp.eq.s32.totalorder %s35, 0
      %p187 = por %p185, %p186
      %p188 = scmp.ne.s32.totalorder %s176, %s177
      %p189 = scmp.eq.s32.totalorder %s36, 1
      %p190 = por %p188, %p189
      %p192 = scmp.ne.s32.totalorder %s177, %s191
      %p193 = scmp.eq.s32.totalorder %s36, 0
      %p194 = por %p192, %p193
      %s196 = sadd.s32 %s195, 1
      %p199 = scmp.eq.s32.totalorder %s30, 1
      %p200 = scmp.ne.s32.totalorder %s195, %s197
      %p201 = scmp.eq.s32.totalorder %s30, 0
      %p202 = por %p200, %p201
      %p203 = scmp.ne.s32.totalorder %s195, %s197
      %p204 = scmp.eq.s32.totalorder %s35, 1
      %p205 = por %p203, %p204
      %p206 = scmp.ne.s32.totalorder %s197, %s198
      %p207 = scmp.eq.s32.totalorder %s35, 0
      %p208 = por %p206, %p207
      %p209 = scmp.ne.s32.totalorder %s197, %s198
      %p210 = scmp.eq.s32.totalorder %s36, 1
      %p211 = por %p209, %p210
      %p213 = scmp.ne.s32.totalorder %s198, %s212
      %p214 = scmp.eq.s32.totalorder %s36, 0
      %p215 = por %p213, %p214
      %s217 = sadd.s32 %s216, 1
      %p220 = scmp.eq.s32.totalorder %s30, 1
      %p221 = scmp.ne.s32.totalorder %s216, %s218
      %p222 = scmp.eq.s32.totalorder %s30, 0
      %p223 = por %p221, %p222
      %p224 = scmp.ne.s32.totalorder %s216, %s218
      %p225 = scmp.eq.s32.totalorder %s35, 1
      %p226 = por %p224, %p225
      %p227 = scmp.ne.s32.totalorder %s218, %s219
      %p228 = scmp.eq.s32.totalorder %s35, 0
      %p229 = por %p227, %p228
      %p230 = scmp.ne.s32.totalorder %s218, %s219
      %p231 = scmp.eq.s32.totalorder %s36, 1
      %p232 = por %p230, %p231
      %p234 = scmp.ne.s32.totalorder %s219, %s233
      %p235 = scmp.eq.s32.totalorder %s36, 0
      %p236 = por %p234, %p235
      %s238 = sadd.s32 %s237, 1
      %p241 = scmp.eq.s32.totalorder %s30, 1
      %p242 = scmp.ne.s32.totalorder %s237, %s239
      %p243 = scmp.eq.s32.totalorder %s30, 0
      %p244 = por %p242, %p243
      %p245 = scmp.ne.s32.totalorder %s237, %s239
      %p246 = scmp.eq.s32.totalorder %s35, 1
      %p247 = por %p245, %p246
      %p248 = scmp.ne.s32.totalorder %s239, %s240
      %p249 = scmp.eq.s32.totalorder %s35, 0
      %p250 = por %p248, %p249
      %p251 = scmp.ne.s32.totalorder %s239, %s240
      %p252 = scmp.eq.s32.totalorder %s36, 1
      %p253 = por %p251, %p252
      %p255 = scmp.ne.s32.totalorder %s240, %s254
      %p256 = scmp.eq.s32.totalorder %s36, 0
      %p257 = por %p255, %p256
      %s259 = sadd.s32 %s258, 1
      %p262 = scmp.eq.s32.totalorder %s30, 1
      %p263 = scmp.ne.s32.totalorder %s258, %s260
      %p264 = scmp.eq.s32.totalorder %s30, 0
      %p265 = por %p263, %p264
      %p266 = scmp.ne.s32.totalorder %s258, %s260
      %p267 = scmp.eq.s32.totalorder %s35, 1
      %p268 = por %p266, %p267
      %p269 = scmp.ne.s32.totalorder %s260, %s261
      %p270 = scmp.eq.s32.totalorder %s35, 0
      %p271 = por %p269, %p270
      %p272 = scmp.ne.s32.totalorder %s260, %s261
      %p273 = scmp.eq.s32.totalorder %s36, 1
      %p274 = por %p272, %p273
      %p276 = scmp.ne.s32.totalorder %s261, %s275
      %p277 = scmp.eq.s32.totalorder %s36, 0
      %p278 = por %p276, %p277
      %s280 = sadd.s32 %s279, 1
      %p283 = scmp.eq.s32.totalorder %s30, 1
      %p284 = scmp.ne.s32.totalorder %s279, %s281
      %p285 = scmp.eq.s32.totalorder %s30, 0
      %p286 = por %p284, %p285
      %p287 = scmp.ne.s32.totalorder %s279, %s281
      %p288 = scmp.eq.s32.totalorder %s35, 1
      %p289 = por %p287, %p288
      %p290 = scmp.ne.s32.totalorder %s281, %s282
      %p291 = scmp.eq.s32.totalorder %s35, 0
      %p292 = por %p290, %p291
      %p293 = scmp.ne.s32.totalorder %s281, %s282
      %p294 = scmp.eq.s32.totalorder %s36, 1
      %p295 = por %p293, %p294
      %p297 = scmp.ne.s32.totalorder %s282, %s296
      %p298 = scmp.eq.s32.totalorder %s36, 0
      %p299 = por %p297, %p298
      %s301 = sadd.s32 %s300, 1
      %p304 = scmp.eq.s32.totalorder %s30, 1
      %p305 = scmp.ne.s32.totalorder %s300, %s302
      %p306 = scmp.eq.s32.totalorder %s30, 0
      %p307 = por %p305, %p306
      %p308 = scmp.ne.s32.totalorder %s300, %s302
      %p309 = scmp.eq.s32.totalorder %s35, 1
      %p310 = por %p308, %p309
      %p311 = scmp.ne.s32.totalorder %s302, %s303
      %p312 = scmp.eq.s32.totalorder %s35, 0
      %p313 = por %p311, %p312
      %p314 = scmp.ne.s32.totalorder %s302, %s303
      %p315 = scmp.eq.s32.totalorder %s36, 1
      %p316 = por %p314, %p315
      %p318 = scmp.ne.s32.totalorder %s303, %s317
      %p319 = scmp.eq.s32.totalorder %s36, 0
      %p320 = por %p318, %p319
      %s322 = sadd.s32 %s321, 1
      %p325 = scmp.eq.s32.totalorder %s30, 1
      %p326 = scmp.ne.s32.totalorder %s321, %s323
      %p327 = scmp.eq.s32.totalorder %s30, 0
      %p328 = por %p326, %p327
      %p329 = scmp.ne.s32.totalorder %s321, %s323
      %p330 = scmp.eq.s32.totalorder %s35, 1
      %p331 = por %p329, %p330
      %p332 = scmp.ne.s32.totalorder %s323, %s324
      %p333 = scmp.eq.s32.totalorder %s35, 0
      %p334 = por %p332, %p333
      %p335 = scmp.ne.s32.totalorder %s323, %s324
      %p336 = scmp.eq.s32.totalorder %s36, 1
      %p337 = por %p335, %p336
      %p339 = scmp.ne.s32.totalorder %s324, %s338
      %p340 = scmp.eq.s32.totalorder %s36, 0
      %p341 = por %p339, %p340
      %s343 = sadd.s32 %s342, 1
      %p346 = scmp.eq.s32.totalorder %s30, 1
      %p347 = scmp.ne.s32.totalorder %s342, %s344
      %p348 = scmp.eq.s32.totalorder %s30, 0
      %p349 = por %p347, %p348
      %p350 = scmp.ne.s32.totalorder %s342, %s344
      %p351 = scmp.eq.s32.totalorder %s35, 1
      %p352 = por %p350, %p351
      %p353 = scmp.ne.s32.totalorder %s344, %s345
      %p354 = scmp.eq.s32.totalorder %s35, 0
      %p355 = por %p353, %p354
      %p356 = scmp.ne.s32.totalorder %s344, %s345
      %p357 = scmp.eq.s32.totalorder %s36, 1
      %p358 = por %p356, %p357
      %p360 = scmp.ne.s32.totalorder %s345, %s359
      %p361 = scmp.eq.s32.totalorder %s36, 0
      %p362 = por %p360, %p361
      %s364 = sadd.s32 %s363, 1
      %p367 = scmp.eq.s32.totalorder %s30, 1
      %p368 = scmp.ne.s32.totalorder %s363, %s365
      %p369 = scmp.eq.s32.totalorder %s30, 0
      %p370 = por %p368, %p369
      %p371 = scmp.ne.s32.totalorder %s363, %s365
      %p372 = scmp.eq.s32.totalorder %s35, 1
      %p373 = por %p371, %p372
      %p374 = scmp.ne.s32.totalorder %s365, %s366
      %p375 = scmp.eq.s32.totalorder %s35, 0
      %p376 = por %p374, %p375
      %p377 = scmp.ne.s32.totalorder %s365, %s366
      %p378 = scmp.eq.s32.totalorder %s36, 1
      %p379 = por %p377, %p378
      %p381 = scmp.ne.s32.totalorder %s366, %s380
      %p382 = scmp.eq.s32.totalorder %s36, 0
      %p383 = por %p381, %p382
      %s385 = sadd.s32 %s384, 1
      %p388 = scmp.eq.s32.totalorder %s30, 1
      %p389 = scmp.ne.s32.totalorder %s384, %s386
      %p390 = scmp.eq.s32.totalorder %s30, 0
      %p391 = por %p389, %p390
      %p392 = scmp.ne.s32.totalorder %s384, %s386
      %p393 = scmp.eq.s32.totalorder %s35, 1
      %p394 = por %p392, %p393
      %p395 = scmp.ne.s32.totalorder %s386, %s387
      %p396 = scmp.eq.s32.totalorder %s35, 0
      %p397 = por %p395, %p396
      %p398 = scmp.ne.s32.totalorder %s386, %s387
      %p399 = scmp.eq.s32.totalorder %s36, 1
      %p400 = por %p398, %p399
      %p402 = scmp.ne.s32.totalorder %s387, %s401
      %p403 = scmp.eq.s32.totalorder %s36, 0
      %p404 = por %p402, %p403
      %s406 = sadd.s32 %s405, 1
      %p409 = scmp.eq.s32.totalorder %s30, 1
      %p410 = scmp.ne.s32.totalorder %s405, %s407
      %p411 = scmp.eq.s32.totalorder %s30, 0
      %p412 = por %p410, %p411
      %p413 = scmp.ne.s32.totalorder %s405, %s407
      %p414 = scmp.eq.s32.totalorder %s35, 1
      %p415 = por %p413, %p414
      %p416 = scmp.ne.s32.totalorder %s407, %s408
      %p417 = scmp.eq.s32.totalorder %s35, 0
      %p418 = por %p416, %p417
      %p419 = scmp.ne.s32.totalorder %s407, %s408
      %p420 = scmp.eq.s32.totalorder %s36, 1
      %p421 = por %p419, %p420
      %p423 = scmp.ne.s32.totalorder %s408, %s422
      %p424 = scmp.eq.s32.totalorder %s36, 0
      %p425 = por %p423, %p424
      %s427 = sadd.s32 %s426, 1
      %p430 = scmp.eq.s32.totalorder %s30, 1
      %p431 = scmp.ne.s32.totalorder %s426, %s428
      %p432 = scmp.eq.s32.totalorder %s30, 0
      %p433 = por %p431, %p432
      %p434 = scmp.ne.s32.totalorder %s426, %s428
      %p435 = scmp.eq.s32.totalorder %s35, 1
      %p436 = por %p434, %p435
      %p437 = scmp.ne.s32.totalorder %s428, %s429
      %p438 = scmp.eq.s32.totalorder %s35, 0
      %p439 = por %p437, %p438
      %p440 = scmp.ne.s32.totalorder %s428, %s429
      %p441 = scmp.eq.s32.totalorder %s36, 1
      %p442 = por %p440, %p441
      %p444 = scmp.ne.s32.totalorder %s429, %s443
      %p445 = scmp.eq.s32.totalorder %s36, 0
      %p446 = por %p444, %p445
      %s448 = sadd.s32 %s447, 1
      %p451 = scmp.eq.s32.totalorder %s30, 1
      %p452 = scmp.ne.s32.totalorder %s447, %s449
      %p453 = scmp.eq.s32.totalorder %s30, 0
      %p454 = por %p452, %p453
      %p455 = scmp.ne.s32.totalorder %s447, %s449
      %p456 = scmp.eq.s32.totalorder %s35, 1
      %p457 = por %p455, %p456
      %p458 = scmp.ne.s32.totalorder %s449, %s450
      %p459 = scmp.eq.s32.totalorder %s35, 0
      %p460 = por %p458, %p459
      %p461 = scmp.ne.s32.totalorder %s449, %s450
      %p462 = scmp.eq.s32.totalorder %s36, 1
      %p463 = por %p461, %p462
      %p465 = scmp.ne.s32.totalorder %s450, %s464
      %p466 = scmp.eq.s32.totalorder %s36, 0
      %p467 = por %p465, %p466
      %s469 = sadd.s32 %s468, 1
      %p472 = scmp.eq.s32.totalorder %s30, 1
      %p473 = scmp.ne.s32.totalorder %s468, %s470
      %p474 = scmp.eq.s32.totalorder %s30, 0
      %p475 = por %p473, %p474
      %p476 = scmp.ne.s32.totalorder %s468, %s470
      %p477 = scmp.eq.s32.totalorder %s35, 1
      %p478 = por %p476, %p477
      %p479 = scmp.ne.s32.totalorder %s470, %s471
      %p480 = scmp.eq.s32.totalorder %s35, 0
      %p481 = por %p479, %p480
      %p482 = scmp.ne.s32.totalorder %s470, %s471
      %p483 = scmp.eq.s32.totalorder %s36, 1
      %p484 = por %p482, %p483
      %p486 = scmp.ne.s32.totalorder %s471, %s485
      %p487 = scmp.eq.s32.totalorder %s36, 0
      %p488 = por %p486, %p487
      %s490 = sadd.s32 %s489, 1
      %p493 = scmp.eq.s32.totalorder %s30, 1
      %p494 = scmp.ne.s32.totalorder %s489, %s491
      %p495 = scmp.eq.s32.totalorder %s30, 0
      %p496 = por %p494, %p495
      %p497 = scmp.ne.s32.totalorder %s489, %s491
      %p498 = scmp.eq.s32.totalorder %s35, 1
      %p499 = por %p497, %p498
      %p500 = scmp.ne.s32.totalorder %s491, %s492
      %p501 = scmp.eq.s32.totalorder %s35, 0
      %p502 = por %p500, %p501
      %p503 = scmp.ne.s32.totalorder %s491, %s492
      %p504 = scmp.eq.s32.totalorder %s36, 1
      %p505 = por %p503, %p504
      %p507 = scmp.ne.s32.totalorder %s492, %s506
      %p508 = scmp.eq.s32.totalorder %s36, 0
      %p509 = por %p507, %p508
      %s510 = ssub.s32 %s30, %s37
      %p511 = scmp.eq.s32.totalorder %s510, 0
      %s513 = sadd.s32 %s512, 1
      %s514 = scalar_select %p511, %s512, %s513
      %p517 = pneg %p511
      %p518 = scmp.eq.s32.totalorder %s30, 1
      %p519 = por %p517, %p518
      %p520 = scmp.ne.s32.totalorder %s512, %s515
      %p521 = scmp.eq.s32.totalorder %s30, 0
      %p522 = por %p520, %p521
      %p523 = scmp.ne.s32.totalorder %s512, %s515
      %p524 = scmp.eq.s32.totalorder %s35, 1
      %p525 = por %p523, %p524
      %p526 = scmp.ne.s32.totalorder %s515, %s516
      %p527 = scmp.eq.s32.totalorder %s35, 0
      %p528 = por %p526, %p527
      %p529 = scmp.ne.s32.totalorder %s515, %s516
      %p530 = scmp.eq.s32.totalorder %s36, 1
      %p531 = por %p529, %p530
      %p533 = scmp.ne.s32.totalorder %s516, %s532
      %p534 = scmp.eq.s32.totalorder %s36, 0
      %p535 = por %p533, %p534
      %p536 = scmp.le.s32.totalorder 1, %s30
      %p537 = scmp.lt.s32.totalorder %s30, 3
      %p538 = pnand %p536, %p537
      %p539 = pneg %p538
      // Predicated region
      $region9: #{tpu_custom_call.1} parent=5 // pred_check
        _
      $region10: #{tpu_custom_call.1} parent=5 // pred_check_branch
        %541 = sbr.rel (%p538) target = $region12
      $region11: #{tpu_custom_call.1} parent=5 // pred_region
        %s542 = ssub.s32 %s30, 1
        // Predicated region
        $region13: #{tpu_custom_call.1} parent=11 // pred_check
          %p543 = pneg %p103
        $region14: #{tpu_custom_call.1} parent=11 // pred_check_branch
          %545 = sbr.rel (%p543) target = $region16
        $region15: #{tpu_custom_call.1} parent=11 // pred_region
          _
        $region16: #{tpu_custom_call.1} parent=11 // pred_fallthru
          _
        // Predicated region
        $region17: #{tpu_custom_call.1} parent=11 // pred_check
          %p546 = pneg %p124
        $region18: #{tpu_custom_call.1} parent=11 // pred_check_branch
          %548 = sbr.rel (%p546) target = $region20
        $region19: #{tpu_custom_call.1} parent=11 // pred_region
          _
        $region20: #{tpu_custom_call.1} parent=11 // pred_fallthru
          _
        // Predicated region
        $region21: #{tpu_custom_call.1} parent=11 // pred_check
          %p549 = pneg %p145
        $region22: #{tpu_custom_call.1} parent=11 // pred_check_branch
          %551 = sbr.rel (%p549) target = $region24
        $region23: #{tpu_custom_call.1} parent=11 // pred_region
          _
        $region24: #{tpu_custom_call.1} parent=11 // pred_fallthru
          _
        // Predicated region
        $region25: #{tpu_custom_call.1} parent=11 // pred_check
          %p552 = pneg %p166
        $region26: #{tpu_custom_call.1} parent=11 // pred_check_branch
          %554 = sbr.rel (%p552) target = $region28
        $region27: #{tpu_custom_call.1} parent=11 // pred_region
          _
        $region28: #{tpu_custom_call.1} parent=11 // pred_fallthru
          _
        // Predicated region
        $region29: #{tpu_custom_call.1} parent=11 // pred_check
          %p555 = pneg %p187
        $region30: #{tpu_custom_call.1} parent=11 // pred_check_branch
          %557 = sbr.rel (%p555) target = $region32
        $region31: #{tpu_custom_call.1} parent=11 // pred_region
          _
        $region32: #{tpu_custom_call.1} parent=11 // pred_fallthru
          _
        // Predicated region
        $region33: #{tpu_custom_call.1} parent=11 // pred_check
          %p558 = pneg %p208
        $region34: #{tpu_custom_call.1} parent=11 // pred_check_branch
          %560 = sbr.rel (%p558) target = $region36
        $region35: #{tpu_custom_call.1} parent=11 // pred_region
          _
        $region36: #{tpu_custom_call.1} parent=11 // pred_fallthru
          _
        // Predicated region
        $region37: #{tpu_custom_call.1} parent=11 // pred_check
          %p561 = pneg %p229
        $region38: #{tpu_custom_call.1} parent=11 // pred_check_branch
          %563 = sbr.rel (%p561) target = $region40
        $region39: #{tpu_custom_call.1} parent=11 // pred_region
          %s565 = ssub.s32 1024, 1024
          %566 = vsyncadd [#allocation3], %s565
          %s567 = sshll.u32 [#allocation2], 4
          %s568 = int_to_ptr.vmem [resolvable:$true] %s567
          %573 = dma.hbm_to_vmem [thread:$0]  %s8, 1024, %s568, [#allocation3], 128, 128, 8
        $region40: #{tpu_custom_call.1} parent=11 // pred_fallthru
          _
        // Predicated region
        $region41: #{tpu_custom_call.1} parent=11 // pred_check
          %p574 = pneg %p250
        $region42: #{tpu_custom_call.1} parent=11 // pred_check_branch
          %576 = sbr.rel (%p574) target = $region44
        $region43: #{tpu_custom_call.1} parent=11 // pred_region
          _
        $region44: #{tpu_custom_call.1} parent=11 // pred_fallthru
          _
        // Predicated region
        $region45: #{tpu_custom_call.1} parent=11 // pred_check
          %p577 = pneg %p271
        $region46: #{tpu_custom_call.1} parent=11 // pred_check_branch
          %579 = sbr.rel (%p577) target = $region48
        $region47: #{tpu_custom_call.1} parent=11 // pred_region
          %s581 = ssub.s32 1024, 1024
          %582 = vsyncadd [#allocation5], %s581
          %s583 = sshll.u32 [#allocation4], 4
          %s584 = int_to_ptr.vmem [resolvable:$true] %s583
          %589 = dma.hbm_to_vmem [thread:$0]  %s10, 1024, %s584, [#allocation5], 128, 128, 8
        $region48: #{tpu_custom_call.1} parent=11 // pred_fallthru
          _
        // Predicated region
        $region49: #{tpu_custom_call.1} parent=11 // pred_check
          %p590 = pneg %p292
        $region50: #{tpu_custom_call.1} parent=11 // pred_check_branch
          %592 = sbr.rel (%p590) target = $region52
        $region51: #{tpu_custom_call.1} parent=11 // pred_region
          _
        $region52: #{tpu_custom_call.1} parent=11 // pred_fallthru
          _
        // Predicated region
        $region53: #{tpu_custom_call.1} parent=11 // pred_check
          %p593 = pneg %p313
        $region54: #{tpu_custom_call.1} parent=11 // pred_check_branch
          %595 = sbr.rel (%p593) target = $region56
        $region55: #{tpu_custom_call.1} parent=11 // pred_region
          _
        $region56: #{tpu_custom_call.1} parent=11 // pred_fallthru
          _
        // Predicated region
        $region57: #{tpu_custom_call.1} parent=11 // pred_check
          %p596 = pneg %p334
        $region58: #{tpu_custom_call.1} parent=11 // pred_check_branch
          %598 = sbr.rel (%p596) target = $region60
        $region59: #{tpu_custom_call.1} parent=11 // pred_region
          _
        $region60: #{tpu_custom_call.1} parent=11 // pred_fallthru
          _
        // Predicated region
        $region61: #{tpu_custom_call.1} parent=11 // pred_check
          %p599 = pneg %p355
        $region62: #{tpu_custom_call.1} parent=11 // pred_check_branch
          %601 = sbr.rel (%p599) target = $region64
        $region63: #{tpu_custom_call.1} parent=11 // pred_region
          _
        $region64: #{tpu_custom_call.1} parent=11 // pred_fallthru
          _
        // Predicated region
        $region65: #{tpu_custom_call.1} parent=11 // pred_check
          %p602 = pneg %p376
        $region66: #{tpu_custom_call.1} parent=11 // pred_check_branch
          %604 = sbr.rel (%p602) target = $region68
        $region67: #{tpu_custom_call.1} parent=11 // pred_region
          _
        $region68: #{tpu_custom_call.1} parent=11 // pred_fallthru
          _
        // Predicated region
        $region69: #{tpu_custom_call.1} parent=11 // pred_check
          %p605 = pneg %p397
        $region70: #{tpu_custom_call.1} parent=11 // pred_check_branch
          %607 = sbr.rel (%p605) target = $region72
        $region71: #{tpu_custom_call.1} parent=11 // pred_region
          _
        $region72: #{tpu_custom_call.1} parent=11 // pred_fallthru
          _
        // Predicated region
        $region73: #{tpu_custom_call.1} parent=11 // pred_check
          %p608 = pneg %p418
        $region74: #{tpu_custom_call.1} parent=11 // pred_check_branch
          %610 = sbr.rel (%p608) target = $region76
        $region75: #{tpu_custom_call.1} parent=11 // pred_region
          _
        $region76: #{tpu_custom_call.1} parent=11 // pred_fallthru
          _
        // Predicated region
        $region77: #{tpu_custom_call.1} parent=11 // pred_check
          %p611 = pneg %p439
        $region78: #{tpu_custom_call.1} parent=11 // pred_check_branch
          %613 = sbr.rel (%p611) target = $region80
        $region79: #{tpu_custom_call.1} parent=11 // pred_region
          _
        $region80: #{tpu_custom_call.1} parent=11 // pred_fallthru
          _
        // Predicated region
        $region81: #{tpu_custom_call.1} parent=11 // pred_check
          %p614 = pneg %p460
        $region82: #{tpu_custom_call.1} parent=11 // pred_check_branch
          %616 = sbr.rel (%p614) target = $region84
        $region83: #{tpu_custom_call.1} parent=11 // pred_region
          _
        $region84: #{tpu_custom_call.1} parent=11 // pred_fallthru
          _
        // Predicated region
        $region85: #{tpu_custom_call.1} parent=11 // pred_check
          %p617 = pneg %p481
        $region86: #{tpu_custom_call.1} parent=11 // pred_check_branch
          %619 = sbr.rel (%p617) target = $region88
        $region87: #{tpu_custom_call.1} parent=11 // pred_region
          _
        $region88: #{tpu_custom_call.1} parent=11 // pred_fallthru
          _
        // Predicated region
        $region89: #{tpu_custom_call.1} parent=11 // pred_check
          %p620 = pneg %p502
        $region90: #{tpu_custom_call.1} parent=11 // pred_check_branch
          %622 = sbr.rel (%p620) target = $region92
        $region91: #{tpu_custom_call.1} parent=11 // pred_region
          _
        $region92: #{tpu_custom_call.1} parent=11 // pred_fallthru
          _
      $region12: #{tpu_custom_call.1} parent=5 // pred_fallthru
        _
      %p623 = scmp.lt.s32.totalorder %s30, 2
      // Predicated region
      $region93: #{tpu_custom_call.1} parent=5 // pred_check
        %p624 = pneg %p623
      $region94: #{tpu_custom_call.1} parent=5 // pred_check_branch
        %626 = sbr.rel (%p624) target = $region96
      $region95: #{tpu_custom_call.1} parent=5 // pred_region
        // Predicated region
        $region97: #{tpu_custom_call.1} parent=95 // pred_check
          %p627 = pneg %p50
        $region98: #{tpu_custom_call.1} parent=95 // pred_check_branch
          %629 = sbr.rel (%p627) target = $region100
        $region99: #{tpu_custom_call.1} parent=95 // pred_region
          %p630 = scmp.lt.s32.totalorder %s30, 1
          %s631 = scalar_select %p630, %s30, 1
          %s632 = smul.addr %s631, 2
          %s633 = smul.addr %s632, 8
          %s634 = scalar_lea.vmem %s0, %s633
        $region100: #{tpu_custom_call.1} parent=95 // pred_fallthru
          _
        // Predicated region
        $region101: #{tpu_custom_call.1} parent=95 // pred_check
          %p635 = pneg %p76
        $region102: #{tpu_custom_call.1} parent=95 // pred_check_branch
          %637 = sbr.rel (%p635) target = $region104
        $region103: #{tpu_custom_call.1} parent=95 // pred_region
          %p638 = scmp.lt.s32.totalorder %s30, 1
          %s639 = scalar_select %p638, %s30, 1
          %s640 = smul.addr %s639, 2
          %s641 = smul.addr %s640, 8
          %s642 = scalar_lea.vmem %s1, %s641
        $region104: #{tpu_custom_call.1} parent=95 // pred_fallthru
          _
      $region96: #{tpu_custom_call.1} parent=5 // pred_fallthru
        _
      %p643 = scmp.le.s32.totalorder 1, %s30
      %p644 = scmp.lt.s32.totalorder %s30, 3
      %p645 = pnand %p643, %p644
      %p646 = pneg %p645
      // Predicated region
      $region105: #{tpu_custom_call.1} parent=5 // pred_check
        _
      $region106: #{tpu_custom_call.1} parent=5 // pred_check_branch
        %648 = sbr.rel (%p645) target = $region108
      $region107: #{tpu_custom_call.1} parent=5 // pred_region
        %s649 = ssub.s32 %s30, 1
        // Predicated region
        $region109: #{tpu_custom_call.1} parent=107 // pred_check
          %p650 = pneg %p229
        $region110: #{tpu_custom_call.1} parent=107 // pred_check_branch
          %652 = sbr.rel (%p650) target = $region112
        $region111: #{tpu_custom_call.1} parent=107 // pred_region
          %653 = dma.done [#allocation3], 1024
        $region112: #{tpu_custom_call.1} parent=107 // pred_fallthru
          _
        // Predicated region
        $region113: #{tpu_custom_call.1} parent=107 // pred_check
          %p654 = pneg %p271
        $region114: #{tpu_custom_call.1} parent=107 // pred_check_branch
          %656 = sbr.rel (%p654) target = $region116
        $region115: #{tpu_custom_call.1} parent=107 // pred_region
          %657 = dma.done [#allocation5], 1024
        $region116: #{tpu_custom_call.1} parent=107 // pred_fallthru
          _
        %p658 = scmp.lt.s32.totalorder %s35, 1
        %s659 = scalar_select %p658, %s35, 1
        %s660 = smul.addr %s659, 2
        %s661 = smul.addr %s660, 8
        %s662 = scalar_lea.vmem %s0, %s661
        %p663 = pneg %p56
        %p664 = pneg %p53
        %p665 = scmp.lt.s32.totalorder %s35, 1
        %s666 = scalar_select %p665, %s35, 1
        %s667 = smul.addr %s666, 2
        %s668 = smul.addr %s667, 8
        %s669 = scalar_lea.vmem %s1, %s668
        %p670 = pneg %p82
        %p671 = pneg %p79
        %p672 = pneg %p103
        %p673 = pneg %p100
        %p674 = pneg %p124
        %p675 = pneg %p121
        %p676 = pneg %p145
        %p677 = pneg %p142
        %p678 = pneg %p166
        %p679 = pneg %p163
        %p680 = pneg %p187
        %p681 = pneg %p184
        %p682 = pneg %p208
        %p683 = pneg %p205
        %p684 = pneg %p229
        %p685 = pneg %p226
        %p686 = pneg %p250
        %p687 = pneg %p247
        %p688 = pneg %p271
        %p689 = pneg %p268
        %p690 = pneg %p292
        %p691 = pneg %p289
        %p692 = pneg %p313
        %p693 = pneg %p310
        %p694 = pneg %p334
        %p695 = pneg %p331
        %p696 = pneg %p355
        %p697 = pneg %p352
        %p698 = pneg %p376
        %p699 = pneg %p373
        %p700 = pneg %p397
        %p701 = pneg %p394
        %p702 = pneg %p418
        %p703 = pneg %p415
        %p704 = pneg %p439
        %p705 = pneg %p436
        %p706 = pneg %p460
        %p707 = pneg %p457
        %p708 = pneg %p481
        %p709 = pneg %p478
        %p710 = pneg %p502
        %p711 = pneg %p499
        %p712 = pneg %p528
        %p713 = pneg %p525
        %p714 = scmp.lt.s32.totalorder %s35, 1
        %s715 = scalar_select %p714, %s35, 1
        %s716 = smul.addr %s715, 2
        %s717 = smul.addr %s716, 8
        %s718 = scalar_lea.vmem %s22, %s717
        %p719 = scmp.lt.s32.totalorder %s35, 1
        %s720 = scalar_select %p719, %s35, 1
        %s721 = smul.addr %s720, 2
        %s722 = smul.addr %s721, 8
        %s723 = scalar_lea.vmem %s0, %s722
        %p724 = scmp.lt.s32.totalorder %s35, 1
        %s725 = scalar_select %p724, %s35, 1
        %s726 = smul.addr %s725, 2
        %s727 = smul.addr %s726, 8
        %s728 = scalar_lea.vmem %s1, %s727
        %p729 = scmp.lt.s32.totalorder %s35, 1
        %s730 = scalar_select %p729, %s35, 1
        %s731 = smul.addr %s730, 2
        %s732 = smul.addr %s731, 8
        %s733 = scalar_lea.vmem %s22, %s732
        %v735 = vld [vmem:[%s723] sm:$0xff]
        %v736 = vld [vmem:[%s723 + $0x8] sm:$0x1]
        %v737 = vld [vmem:[%s728] sm:$0xff]
        %v738 = vld [vmem:[%s728 + $0x8] sm:$0xf]
        %v739 = vld [vmem:[%s2] sm:$0xff]
        %v740 = vld [vmem:[%s2 + $0x8] sm:$0xff]
        %v741 = vld [vmem:[%s2 + $0x10] sm:$0xff]
        %v742 = vld [vmem:[%s2 + $0x18] sm:$0xff]
        %v743 = vld [vmem:[%s2 + $0x20] sm:$0xff]
        %v744 = vld [vmem:[%s2 + $0x28] sm:$0xff]
        %v745 = vld [vmem:[%s2 + $0x30] sm:$0xff]
        %v746 = vld [vmem:[%s2 + $0x38] sm:$0xff]
        %v747 = vld [vmem:[%s2 + $0x40] sm:$0xff]
        %v748 = vld [vmem:[%s2 + $0x48] sm:$0xff]
        %v749 = vld [vmem:[%s2 + $0x50] sm:$0xff]
        %v750 = vld [vmem:[%s2 + $0x58] sm:$0xff]
        %v751 = vld [vmem:[%s2 + $0x60] sm:$0xff]
        %v752 = vld [vmem:[%s2 + $0x68] sm:$0xff]
        %v753 = vld [vmem:[%s2 + $0x70] sm:$0xff]
        %v754 = vld [vmem:[%s2 + $0x78] sm:$0xff]
        %v755 = vpack.c.bf16 %v736, %v735
        %v756 = vpack.c.bf16 %v741, %v739
        %v757 = vpack.c.bf16 %v742, %v740
        %v758 = vpack.c.bf16 %v745, %v743
        %v759 = vpack.c.bf16 %v746, %v744
        %v760 = vpack.c.bf16 %v749, %v747
        %v761 = vpack.c.bf16 %v750, %v748
        %v762 = vpack.c.bf16 %v753, %v751
        %v763 = vpack.c.bf16 %v754, %v752
        %v764 = vld [vmem:[%s3] sm:$0x3]
        %v766 = vlaneseq
        %v767 = vshrl.u32 %v766, 7
        %v768 = vsub.s32 0, %v767
        %v769 = vrot.slane %v764, %v768
        %v770 = vlaneseq
        %v771 = vshrl.u32 %v770, 7
        %v772 = vsub.s32 1, %v771
        %v773 = vrot.slane %v764, %v772
        %vm776 = vcmask 523264
        %v778 = vsel %vm776, %v755, 0
        %780 = vmatprep.subr.bf16.mxu0 %v757
        %781 = vmatpush1.bf16.msra.mxu0 %v756
        %782 = vmatprep.subr.bf16.mxu0 %v759
        %783 = vmatpush1.bf16.msra.mxu0 %v758
        %784 = vmatprep.subr.bf16.mxu0 %v761
        %785 = vmatpush1.bf16.msra.mxu0 %v760
        %786 = vmatprep.subr.bf16.mxu0 %v763
        %787 = vmatpush1.bf16.msra.mxu0 %v762
        %788 = vmatprep.subr.bf16.mxu0 0
        %789 = vmatpush1.bf16.msra.mxu0 0
        %790 = vmatprep.subr.bf16.mxu0 0
        %791 = vmatpush1.bf16.msra.mxu0 0
        %792 = vmatprep.subr.bf16.mxu0 0
        %793 = vmatpush1.bf16.msra.mxu0 0
        %794 = vmatprep.subr.bf16.mxu0 0
        %795 = vmatpush1.bf16.msra.mxu0 0
        %796 = vmatprep.subr.bf16.mxu0 0
        %797 = vmatpush1.bf16.msra.mxu0 0
        %798 = vmatprep.subr.bf16.mxu0 0
        %799 = vmatpush1.bf16.msra.mxu0 0
        %800 = vmatprep.subr.bf16.mxu0 0
        %801 = vmatpush1.bf16.msra.mxu0 0
        %802 = vmatprep.subr.bf16.mxu0 0
        %803 = vmatpush1.bf16.msra.mxu0 0
        %804 = vmatprep.subr.bf16.mxu0 0
        %805 = vmatpush1.bf16.msra.mxu0 0
        %806 = vmatprep.subr.bf16.mxu0 0
        %807 = vmatpush1.bf16.msra.mxu0 0
        %808 = vmatprep.subr.bf16.mxu0 0
        %809 = vmatpush1.bf16.msra.mxu0 0
        %810 = vmatprep.subr.bf16.mxu0 0
        %811 = vmatpush1.bf16.msra.mxu0 0
        %812 = vmatprep.mubr.bf16.mxu0 0
        %813 = vmatmul.mubr.bf16.gmra.mrb[0].mxu0 %v778
        %v814 = vpop.f32.mrb[0].mxu0
        %v815 = vadd.f32 %v769, %v814
        %v816 = vpop.f32.mrb[0].mxu0
        %v817 = vadd.f32 %v773, %v816
        %v818 = vpop.f32.mrb[0].mxu0
        %v819 = vadd.f32 %v769, %v818
        %v820 = vpop.f32.mrb[0].mxu0
        %v821 = vadd.f32 %v773, %v820
        %822 = vdwg.mxu0
        %v823 = vmul.f32 %v815, 0.125
        %v824 = vmul.f32 %v819, 0.125
        %v825 = vpack.c.bf16 %v824, %v823
        %v826 = vpack.c.bf16 %v819, %v815
        %828 = vrot.lane.b32.xlu0 %v826, 64
        %v829 = vpop.permute.xlu0 %828
        %v831 = vsel %vm776, %v825, 0
        %v834 = vsel %vm776, %v829, 0
        %836 = vmatprep.subr.bf16.mxu0 0
        %837 = vmatpush1.bf16.xpose.msra.mxu0 %v834
        %838 = vmatprep.subr.bf16.mxu0 0
        %839 = vmatpush1.bf16.xpose.msra.mxu0 0
        %840 = vmatprep.subr.bf16.mxu0 0
        %841 = vmatpush1.bf16.xpose.msra.mxu0 0
        %842 = vmatprep.subr.bf16.mxu0 0
        %843 = vmatpush1.bf16.xpose.msra.mxu0 0
        %844 = vmatprep.subr.bf16.mxu0 0
        %845 = vmatpush1.bf16.xpose.msra.mxu0 0
        %846 = vmatprep.subr.bf16.mxu0 0
        %847 = vmatpush1.bf16.xpose.msra.mxu0 0
        %848 = vmatprep.subr.bf16.mxu0 0
        %849 = vmatpush1.bf16.xpose.msra.mxu0 0
        %850 = vmatprep.subr.bf16.mxu0 0
        %851 = vmatpush1.bf16.xpose.msra.mxu0 0
        %852 = vmatprep.subr.bf16.mxu0 0
        %853 = vmatpush1.bf16.xpose.msra.mxu0 0
        %854 = vmatprep.subr.bf16.mxu0 0
        %855 = vmatpush1.bf16.xpose.msra.mxu0 0
        %856 = vmatprep.subr.bf16.mxu0 0
        %857 = vmatpush1.bf16.xpose.msra.mxu0 0
        %858 = vmatprep.subr.bf16.mxu0 0
        %859 = vmatpush1.bf16.xpose.msra.mxu0 0
        %860 = vmatprep.subr.bf16.mxu0 0
        %861 = vmatpush1.bf16.xpose.msra.mxu0 0
        %862 = vmatprep.subr.bf16.mxu0 0
        %863 = vmatpush1.bf16.xpose.msra.mxu0 0
        %864 = vmatprep.subr.bf16.mxu0 0
        %865 = vmatpush1.bf16.xpose.msra.mxu0 0
        %866 = vmatprep.subr.bf16.mxu0 0
        %867 = vmatpush1.bf16.xpose.msra.mxu0 0
        %868 = vmatprep.mubr.bf16.mxu0 0
        %869 = vmatmul.mubr.bf16.gmra.mrb[0].mxu0 %v831
        %v870 = vpop.f32.mrb[0].mxu0
        %v871 = vadd.f32 0.0, %v870
        %v872 = vpop.f32.mrb[0].mxu0
        %v873 = vpop.f32.mrb[0].mxu0
        %v874 = vadd.f32 0.0, %v873
        %v875 = vpop.f32.mrb[0].mxu0
        %876 = vdwg.mxu0
        %vm877 = vcmask 72704
        %v878 = vsel %vm877, %v871, -inf
        %879 = vmax.xlane.f32.xlu0 %v878
        %v880 = vpop.xlane.xlu0 %879
        %vm881 = vcmask 65536
        %v882 = vsel %vm881, %v874, -inf
        %883 = vmax.xlane.f32.xlu0 %v882
        %v884 = vpop.xlane.xlu0 %883
        %v885 = vsub.f32 %v871, %v880
        %v886 = vsub.f32 %v874, %v884
        %v887 = vmul.f32 %v885, 1.442695
        %v888 = vpow.pop %v887
        %v889 = vmul.f32 %v886, 1.442695
        %v890 = vpow.pop %v889
        %v891 = vsel %vm877, %v888, 0.0
        %892 = vadd.xlane.f32.xlu0 %v891
        %v893 = vpop.xlane.xlu0 %892
        %v894 = vsel %vm881, %v890, 0.0
        %895 = vadd.xlane.f32.xlu0 %v894
        %v896 = vpop.xlane.xlu0 %895
        %v897 = vrcp.pop %v893
        %v898 = vrcp.pop %v896
        %v899 = vmul.f32 %v888, %v897
        %v900 = vmul.f32 %v890, %v898
        %v901 = vpack.c.bf16 %v900, %v899
        %v902 = vpack.c.bf16 %v821, %v817
        %v904 = vsel %vm877, %v901, 0
        %vm906 = vcmask 1043456
        %vm907 = vcmask 1044480
        %v908 = vsel %vm906, 4294967295, 65535
        %v909 = vsel %vm907, %v908, 0
        %v911 = vand.u32 %v902, %v909
        %913 = vmatprep.subr.bf16.mxu0 0
        %914 = vmatpush1.bf16.msra.mxu0 %v911
        %915 = vmatprep.subr.bf16.mxu0 0
        %916 = vmatpush1.bf16.msra.mxu0 0
        %917 = vmatprep.subr.bf16.mxu0 0
        %918 = vmatpush1.bf16.msra.mxu0 0
        %919 = vmatprep.subr.bf16.mxu0 0
        %920 = vmatpush1.bf16.msra.mxu0 0
        %921 = vmatprep.subr.bf16.mxu0 0
        %922 = vmatpush1.bf16.msra.mxu0 0
        %923 = vmatprep.subr.bf16.mxu0 0
        %924 = vmatpush1.bf16.msra.mxu0 0
        %925 = vmatprep.subr.bf16.mxu0 0
        %926 = vmatpush1.bf16.msra.mxu0 0
        %927 = vmatprep.subr.bf16.mxu0 0
        %928 = vmatpush1.bf16.msra.mxu0 0
        %929 = vmatprep.subr.bf16.mxu0 0
        %930 = vmatpush1.bf16.msra.mxu0 0
        %931 = vmatprep.subr.bf16.mxu0 0
        %932 = vmatpush1.bf16.msra.mxu0 0
        %933 = vmatprep.subr.bf16.mxu0 0
        %934 = vmatpush1.bf16.msra.mxu0 0
        %935 = vmatprep.subr.bf16.mxu0 0
        %936 = vmatpush1.bf16.msra.mxu0 0
        %937 = vmatprep.subr.bf16.mxu0 0
        %938 = vmatpush1.bf16.msra.mxu0 0
        %939 = vmatprep.subr.bf16.mxu0 0
        %940 = vmatpush1.bf16.msra.mxu0 0
        %941 = vmatprep.subr.bf16.mxu0 0
        %942 = vmatpush1.bf16.msra.mxu0 0
        %943 = vmatprep.subr.bf16.mxu0 0
        %944 = vmatpush1.bf16.msra.mxu0 0
        %945 = vmatprep.mubr.bf16.mxu0 0
        %946 = vmatmul.mubr.bf16.gmra.mrb[0].mxu0 %v904
        %v947 = vpop.f32.mrb[0].mxu0
        %v948 = vadd.f32 0.0, %v947
        %v949 = vpop.f32.mrb[0].mxu0
        %v950 = vpop.f32.mrb[0].mxu0
        %v951 = vadd.f32 0.0, %v950
        %v952 = vpop.f32.mrb[0].mxu0
        %953 = vdwg.mxu0
        %v954 = vld [vmem:[%s4] sm:$0xff]
        %v955 = vld [vmem:[%s4 + $0x8] sm:$0xff]
        %v956 = vld [vmem:[%s4 + $0x10] sm:$0xff]
        %v957 = vld [vmem:[%s4 + $0x18] sm:$0xff]
        %v958 = vld [vmem:[%s4 + $0x20] sm:$0xff]
        %v959 = vld [vmem:[%s4 + $0x28] sm:$0xff]
        %v960 = vld [vmem:[%s4 + $0x30] sm:$0xff]
        %v961 = vld [vmem:[%s4 + $0x38] sm:$0xff]
        %v962 = vpack.c.bf16 %v951, %v948
        %v963 = vpack.c.bf16 %v955, %v954
        %v964 = vpack.c.bf16 %v957, %v956
        %v965 = vpack.c.bf16 %v959, %v958
        %v966 = vpack.c.bf16 %v961, %v960
        %v967 = vld [vmem:[%s5] sm:$0x1]
        %v969 = vlaneseq
        %v970 = vshrl.u32 %v969, 7
        %v971 = vsub.s32 0, %v970
        %v972 = vrot.slane %v967, %v971
        %v975 = vsel %vm776, %v962, 0
        %977 = vmatprep.subr.bf16.mxu0 0
        %978 = vmatpush1.bf16.msra.mxu0 %v963
        %979 = vmatprep.subr.bf16.mxu0 0
        %980 = vmatpush1.bf16.msra.mxu0 %v964
        %981 = vmatprep.subr.bf16.mxu0 0
        %982 = vmatpush1.bf16.msra.mxu0 %v965
        %983 = vmatprep.subr.bf16.mxu0 0
        %984 = vmatpush1.bf16.msra.mxu0 %v966
        %985 = vmatprep.subr.bf16.mxu0 0
        %986 = vmatpush1.bf16.msra.mxu0 0
        %987 = vmatprep.subr.bf16.mxu0 0
        %988 = vmatpush1.bf16.msra.mxu0 0
        %989 = vmatprep.subr.bf16.mxu0 0
        %990 = vmatpush1.bf16.msra.mxu0 0
        %991 = vmatprep.subr.bf16.mxu0 0
        %992 = vmatpush1.bf16.msra.mxu0 0
        %993 = vmatprep.subr.bf16.mxu0 0
        %994 = vmatpush1.bf16.msra.mxu0 0
        %995 = vmatprep.subr.bf16.mxu0 0
        %996 = vmatpush1.bf16.msra.mxu0 0
        %997 = vmatprep.subr.bf16.mxu0 0
        %998 = vmatpush1.bf16.msra.mxu0 0
        %999 = vmatprep.subr.bf16.mxu0 0
        %1000 = vmatpush1.bf16.msra.mxu0 0
        %1001 = vmatprep.subr.bf16.mxu0 0
        %1002 = vmatpush1.bf16.msra.mxu0 0
        %1003 = vmatprep.subr.bf16.mxu0 0
        %1004 = vmatpush1.bf16.msra.mxu0 0
        %1005 = vmatprep.subr.bf16.mxu0 0
        %1006 = vmatpush1.bf16.msra.mxu0 0
        %1007 = vmatprep.subr.bf16.mxu0 0
        %1008 = vmatpush1.bf16.msra.mxu0 0
        %1009 = vmatprep.mubr.bf16.mxu0 0
        %1010 = vmatmul.mubr.bf16.gmra.mrb[0].mxu0 %v975
        %v1011 = vpop.f32.mrb[0].mxu0
        %v1012 = vadd.f32 %v972, %v1011
        %v1013 = vpop.f32.mrb[0].mxu0
        %v1014 = vpop.f32.mrb[0].mxu0
        %v1015 = vadd.f32 %v972, %v1014
        %v1016 = vpop.f32.mrb[0].mxu0
        %1017 = vdwg.mxu0
        %v1018 = vadd.f32 %v735, %v1012
        %v1019 = vadd.f32 %v736, %v1015
        %v1020 = vld [vmem:[%s16] sm:$0x1]
        %v1021 = vld [vmem:[%s17] sm:$0x1]
        %v1022 = vsel %vm776, %v1018, 0.0
        %1023 = vadd.xlane.f32.xlu0 %v1022
        %v1024 = vpop.xlane.xlu0 %1023
        %vm1025 = vcmask 516096
        %v1026 = vsel %vm1025, %v1019, 0.0
        %1027 = vadd.xlane.f32.xlu0 %v1026
        %v1028 = vpop.xlane.xlu0 %1027
        %v1029 = vrcp.pop 64.0
        %v1030 = vmul.f32 %v1024, %v1029
        %v1031 = vmul.f32 %v1028, %v1029
        %v1032 = vsub.f32 %v1018, %v1030
        %v1033 = vsub.f32 %v1019, %v1031
        %v1034 = vmul.f32 %v1032, %v1032
        %v1035 = vmul.f32 %v1033, %v1033
        %v1036 = vsel %vm776, %v1034, 0.0
        %1037 = vadd.xlane.f32.xlu0 %v1036
        %v1038 = vpop.xlane.xlu0 %1037
        %v1039 = vsel %vm1025, %v1035, 0.0
        %1040 = vadd.xlane.f32.xlu0 %v1039
        %v1041 = vpop.xlane.xlu0 %1040
        %v1042 = vmul.f32 %v1038, %v1029
        %v1043 = vmul.f32 %v1041, %v1029
        %v1044 = vadd.f32 %v1042, 1e-05
        %v1045 = vadd.f32 %v1043, 1e-05
        %v1046 = vrsqrt.pop %v1044
        %v1047 = vrsqrt.pop %v1045
        %v1048 = vmul.f32 %v1032, %v1046
        %v1049 = vmul.f32 %v1033, %v1047
        %v1051 = vlaneseq
        %v1052 = vshrl.u32 %v1051, 7
        %v1053 = vsub.s32 0, %v1052
        %v1054 = vrot.slane %v1020, %v1053
        %v1056 = vmul.f32 %v1048, %v1054
        %v1057 = vmul.f32 %v1049, %v1054
        %v1059 = vlaneseq
        %v1060 = vshrl.u32 %v1059, 7
        %v1061 = vsub.s32 0, %v1060
        %v1062 = vrot.slane %v1021, %v1061
        %v1064 = vadd.f32 %v1056, %v1062
        %v1065 = vadd.f32 %v1057, %v1062
        %v1066 = vld [vmem:[%s6] sm:$0xff]
        %v1067 = vld [vmem:[%s6 + $0x8] sm:$0xff]
        %v1068 = vld [vmem:[%s6 + $0x10] sm:$0xff]
        %v1069 = vld [vmem:[%s6 + $0x18] sm:$0xff]
        %v1070 = vld [vmem:[%s6 + $0x20] sm:$0xff]
        %v1071 = vld [vmem:[%s6 + $0x28] sm:$0xff]
        %v1072 = vld [vmem:[%s6 + $0x30] sm:$0xff]
        %v1073 = vld [vmem:[%s6 + $0x38] sm:$0xff]
        %v1074 = vpack.c.bf16 %v1065, %v1064
        %v1075 = vpack.c.bf16 %v1067, %v1066
        %v1076 = vpack.c.bf16 %v1069, %v1068
        %v1077 = vpack.c.bf16 %v1071, %v1070
        %v1078 = vpack.c.bf16 %v1073, %v1072
        %v1079 = vld [vmem:[%s7] sm:$0x1]
        %v1081 = vlaneseq
        %v1082 = vshrl.u32 %v1081, 7
        %v1083 = vsub.s32 0, %v1082
        %v1084 = vrot.slane %v1079, %v1083
        %v1087 = vsel %vm776, %v1074, 0
        %1089 = vmatprep.subr.bf16.mxu0 0
        %1090 = vmatpush1.bf16.msra.mxu0 %v1075
        %1091 = vmatprep.subr.bf16.mxu0 0
        %1092 = vmatpush1.bf16.msra.mxu0 %v1076
        %1093 = vmatprep.subr.bf16.mxu0 0
        %1094 = vmatpush1.bf16.msra.mxu0 %v1077
        %1095 = vmatprep.subr.bf16.mxu0 0
        %1096 = vmatpush1.bf16.msra.mxu0 %v1078
        %1097 = vmatprep.subr.bf16.mxu0 0
        %1098 = vmatpush1.bf16.msra.mxu0 0
        %1099 = vmatprep.subr.bf16.mxu0 0
        %1100 = vmatpush1.bf16.msra.mxu0 0
        %1101 = vmatprep.subr.bf16.mxu0 0
        %1102 = vmatpush1.bf16.msra.mxu0 0
        %1103 = vmatprep.subr.bf16.mxu0 0
        %1104 = vmatpush1.bf16.msra.mxu0 0
        %1105 = vmatprep.subr.bf16.mxu0 0
        %1106 = vmatpush1.bf16.msra.mxu0 0
        %1107 = vmatprep.subr.bf16.mxu0 0
        %1108 = vmatpush1.bf16.msra.mxu0 0
        %1109 = vmatprep.subr.bf16.mxu0 0
        %1110 = vmatpush1.bf16.msra.mxu0 0
        %1111 = vmatprep.subr.bf16.mxu0 0
        %1112 = vmatpush1.bf16.msra.mxu0 0
        %1113 = vmatprep.subr.bf16.mxu0 0
        %1114 = vmatpush1.bf16.msra.mxu0 0
        %1115 = vmatprep.subr.bf16.mxu0 0
        %1116 = vmatpush1.bf16.msra.mxu0 0
        %1117 = vmatprep.subr.bf16.mxu0 0
        %1118 = vmatpush1.bf16.msra.mxu0 0
        %1119 = vmatprep.subr.bf16.mxu0 0
        %1120 = vmatpush1.bf16.msra.mxu0 0
        %1121 = vmatprep.mubr.bf16.mxu0 0
        %1122 = vmatmul.mubr.bf16.gmra.mrb[0].mxu0 %v1087
        %v1123 = vpop.f32.mrb[0].mxu0
        %v1124 = vadd.f32 %v1084, %v1123
        %v1125 = vpop.f32.mrb[0].mxu0
        %v1126 = vpop.f32.mrb[0].mxu0
        %v1127 = vadd.f32 %v1084, %v1126
        %v1128 = vpop.f32.mrb[0].mxu0
        %1129 = vdwg.mxu0
        %v1130 = vld [vmem:[#allocation2] sm:$0xff]
        %v1131 = vld [vmem:[#allocation2 + $0x8] sm:$0xff]
        %v1132 = vld [vmem:[#allocation2 + $0x10] sm:$0xff]
        %v1133 = vld [vmem:[#allocation2 + $0x18] sm:$0xff]
        %v1134 = vld [vmem:[#allocation2 + $0x20] sm:$0xff]
        %v1135 = vld [vmem:[#allocation2 + $0x28] sm:$0xff]
        %v1136 = vld [vmem:[#allocation2 + $0x30] sm:$0xff]
        %v1137 = vld [vmem:[#allocation2 + $0x38] sm:$0xff]
        %v1138 = vpack.c.bf16 %v738, %v737
        %v1139 = vpack.c.bf16 %v1131, %v1130
        %v1140 = vpack.c.bf16 %v1133, %v1132
        %v1141 = vpack.c.bf16 %v1135, %v1134
        %v1142 = vpack.c.bf16 %v1137, %v1136
        %v1143 = vld [vmem:[%s9] sm:$0x1]
        %v1145 = vlaneseq
        %v1146 = vshrl.u32 %v1145, 7
        %v1147 = vsub.s32 0, %v1146
        %v1148 = vrot.slane %v1143, %v1147
        %v1151 = vsel %vm776, %v1138, 0
        %1153 = vmatprep.subr.bf16.mxu0 0
        %1154 = vmatpush1.bf16.msra.mxu0 %v1139
        %1155 = vmatprep.subr.bf16.mxu0 0
        %1156 = vmatpush1.bf16.msra.mxu0 %v1140
        %1157 = vmatprep.subr.bf16.mxu0 0
        %1158 = vmatpush1.bf16.msra.mxu0 %v1141
        %1159 = vmatprep.subr.bf16.mxu0 0
        %1160 = vmatpush1.bf16.msra.mxu0 %v1142
        %1161 = vmatprep.subr.bf16.mxu0 0
        %1162 = vmatpush1.bf16.msra.mxu0 0
        %1163 = vmatprep.subr.bf16.mxu0 0
        %1164 = vmatpush1.bf16.msra.mxu0 0
        %1165 = vmatprep.subr.bf16.mxu0 0
        %1166 = vmatpush1.bf16.msra.mxu0 0
        %1167 = vmatprep.subr.bf16.mxu0 0
        %1168 = vmatpush1.bf16.msra.mxu0 0
        %1169 = vmatprep.subr.bf16.mxu0 0
        %1170 = vmatpush1.bf16.msra.mxu0 0
        %1171 = vmatprep.subr.bf16.mxu0 0
        %1172 = vmatpush1.bf16.msra.mxu0 0
        %1173 = vmatprep.subr.bf16.mxu0 0
        %1174 = vmatpush1.bf16.msra.mxu0 0
        %1175 = vmatprep.subr.bf16.mxu0 0
        %1176 = vmatpush1.bf16.msra.mxu0 0
        %1177 = vmatprep.subr.bf16.mxu0 0
        %1178 = vmatpush1.bf16.msra.mxu0 0
        %1179 = vmatprep.subr.bf16.mxu0 0
        %1180 = vmatpush1.bf16.msra.mxu0 0
        %1181 = vmatprep.subr.bf16.mxu0 0
        %1182 = vmatpush1.bf16.msra.mxu0 0
        %1183 = vmatprep.subr.bf16.mxu0 0
        %1184 = vmatpush1.bf16.msra.mxu0 0
        %1185 = vmatprep.mubr.bf16.mxu0 0
        %1186 = vmatmul.mubr.bf16.gmra.mrb[0].mxu0 %v1151
        %v1187 = vpop.f32.mrb[0].mxu0
        %v1188 = vadd.f32 %v1148, %v1187
        %v1189 = vpop.f32.mrb[0].mxu0
        %v1190 = vpop.f32.mrb[0].mxu0
        %v1191 = vadd.f32 %v1148, %v1190
        %v1192 = vpop.f32.mrb[0].mxu0
        %1193 = vdwg.mxu0
        %v1194 = vmul.f32 %v1124, 0.125
        %v1195 = vmul.f32 %v1127, 0.125
        %v1196 = vpack.c.bf16 %v1195, %v1194
        %v1197 = vpack.c.bf16 %v1191, %v1188
        %v1199 = vsel %vm776, %v1196, 0
        %v1202 = vsel %vm776, %v1197, 0
        %1204 = vmatprep.subr.bf16.mxu0 0
        %1205 = vmatpush1.bf16.xpose.msra.mxu0 %v1202
        %1206 = vmatprep.subr.bf16.mxu0 0
        %1207 = vmatpush1.bf16.xpose.msra.mxu0 0
        %1208 = vmatprep.subr.bf16.mxu0 0
        %1209 = vmatpush1.bf16.xpose.msra.mxu0 0
        %1210 = vmatprep.subr.bf16.mxu0 0
        %1211 = vmatpush1.bf16.xpose.msra.mxu0 0
        %1212 = vmatprep.subr.bf16.mxu0 0
        %1213 = vmatpush1.bf16.xpose.msra.mxu0 0
        %1214 = vmatprep.subr.bf16.mxu0 0
        %1215 = vmatpush1.bf16.xpose.msra.mxu0 0
        %1216 = vmatprep.subr.bf16.mxu0 0
        %1217 = vmatpush1.bf16.xpose.msra.mxu0 0
        %1218 = vmatprep.subr.bf16.mxu0 0
        %1219 = vmatpush1.bf16.xpose.msra.mxu0 0
        %1220 = vmatprep.subr.bf16.mxu0 0
        %1221 = vmatpush1.bf16.xpose.msra.mxu0 0
        %1222 = vmatprep.subr.bf16.mxu0 0
        %1223 = vmatpush1.bf16.xpose.msra.mxu0 0
        %1224 = vmatprep.subr.bf16.mxu0 0
        %1225 = vmatpush1.bf16.xpose.msra.mxu0 0
        %1226 = vmatprep.subr.bf16.mxu0 0
        %1227 = vmatpush1.bf16.xpose.msra.mxu0 0
        %1228 = vmatprep.subr.bf16.mxu0 0
        %1229 = vmatpush1.bf16.xpose.msra.mxu0 0
        %1230 = vmatprep.subr.bf16.mxu0 0
        %1231 = vmatpush1.bf16.xpose.msra.mxu0 0
        %1232 = vmatprep.subr.bf16.mxu0 0
        %1233 = vmatpush1.bf16.xpose.msra.mxu0 0
        %1234 = vmatprep.subr.bf16.mxu0 0
        %1235 = vmatpush1.bf16.xpose.msra.mxu0 0
        %1236 = vmatprep.mubr.bf16.mxu0 0
        %1237 = vmatmul.mubr.bf16.gmra.mrb[0].mxu0 %v1199
        %v1238 = vpop.f32.mrb[0].mxu0
        %v1239 = vadd.f32 0.0, %v1238
        %v1240 = vpop.f32.mrb[0].mxu0
        %v1241 = vpop.f32.mrb[0].mxu0
        %v1242 = vadd.f32 0.0, %v1241
        %v1243 = vpop.f32.mrb[0].mxu0
        %1244 = vdwg.mxu0
        %vm1245 = vcmask 97280
        %v1246 = vsel %vm1245, %v1239, -inf
        %1247 = vmax.xlane.f32.xlu0 %v1246
        %v1248 = vpop.xlane.xlu0 %1247
        %vm1249 = vcmask 90112
        %v1250 = vsel %vm1249, %v1242, -inf
        %1251 = vmax.xlane.f32.xlu0 %v1250
        %v1252 = vpop.xlane.xlu0 %1251
        %v1253 = vsub.f32 %v1239, %v1248
        %v1254 = vsub.f32 %v1242, %v1252
        %v1255 = vmul.f32 %v1253, 1.442695
        %v1256 = vpow.pop %v1255
        %v1257 = vmul.f32 %v1254, 1.442695
        %v1258 = vpow.pop %v1257
        %v1259 = vsel %vm1245, %v1256, 0.0
        %1260 = vadd.xlane.f32.xlu0 %v1259
        %v1261 = vpop.xlane.xlu0 %1260
        %v1262 = vsel %vm1249, %v1258, 0.0
        %1263 = vadd.xlane.f32.xlu0 %v1262
        %v1264 = vpop.xlane.xlu0 %1263
        %v1265 = vrcp.pop %v1261
        %v1266 = vrcp.pop %v1264
        %v1267 = vmul.f32 %v1256, %v1265
        %v1268 = vmul.f32 %v1258, %v1266
        %v1269 = vpack.c.bf16 %v1268, %v1267
        %1271 = vrot.lane.b32.xlu0 %v1197, 64
        %v1272 = vpop.permute.xlu0 %1271
        %v1274 = vsel %vm1245, %v1269, 0
        %vm1276 = vcmask 1045504
        %v1278 = vsel %vm1276, %v1272, 0
        %1280 = vmatprep.subr.bf16.mxu0 0
        %1281 = vmatpush1.bf16.msra.mxu0 %v1278
        %1282 = vmatprep.subr.bf16.mxu0 0
        %1283 = vmatpush1.bf16.msra.mxu0 0
        %1284 = vmatprep.subr.bf16.mxu0 0
        %1285 = vmatpush1.bf16.msra.mxu0 0
        %1286 = vmatprep.subr.bf16.mxu0 0
        %1287 = vmatpush1.bf16.msra.mxu0 0
        %1288 = vmatprep.subr.bf16.mxu0 0
        %1289 = vmatpush1.bf16.msra.mxu0 0
        %1290 = vmatprep.subr.bf16.mxu0 0
        %1291 = vmatpush1.bf16.msra.mxu0 0
        %1292 = vmatprep.subr.bf16.mxu0 0
        %1293 = vmatpush1.bf16.msra.mxu0 0
        %1294 = vmatprep.subr.bf16.mxu0 0
        %1295 = vmatpush1.bf16.msra.mxu0 0
        %1296 = vmatprep.subr.bf16.mxu0 0
        %1297 = vmatpush1.bf16.msra.mxu0 0
        %1298 = vmatprep.subr.bf16.mxu0 0
        %1299 = vmatpush1.bf16.msra.mxu0 0
        %1300 = vmatprep.subr.bf16.mxu0 0
        %1301 = vmatpush1.bf16.msra.mxu0 0
        %1302 = vmatprep.subr.bf16.mxu0 0
        %1303 = vmatpush1.bf16.msra.mxu0 0
        %1304 = vmatprep.subr.bf16.mxu0 0
        %1305 = vmatpush1.bf16.msra.mxu0 0
        %1306 = vmatprep.subr.bf16.mxu0 0
        %1307 = vmatpush1.bf16.msra.mxu0 0
        %1308 = vmatprep.subr.bf16.mxu0 0
        %1309 = vmatpush1.bf16.msra.mxu0 0
        %1310 = vmatprep.subr.bf16.mxu0 0
        %1311 = vmatpush1.bf16.msra.mxu0 0
        %1312 = vmatprep.mubr.bf16.mxu0 0
        %1313 = vmatmul.mubr.bf16.gmra.mrb[0].mxu0 %v1274
        %v1314 = vpop.f32.mrb[0].mxu0
        %v1315 = vadd.f32 0.0, %v1314
        %v1316 = vpop.f32.mrb[0].mxu0
        %v1317 = vpop.f32.mrb[0].mxu0
        %v1318 = vadd.f32 0.0, %v1317
        %v1319 = vpop.f32.mrb[0].mxu0
        %1320 = vdwg.mxu0
        %v1321 = vld [vmem:[#allocation4] sm:$0xff]
        %v1322 = vld [vmem:[#allocation4 + $0x8] sm:$0xff]
        %v1323 = vld [vmem:[#allocation4 + $0x10] sm:$0xff]
        %v1324 = vld [vmem:[#allocation4 + $0x18] sm:$0xff]
        %v1325 = vld [vmem:[#allocation4 + $0x20] sm:$0xff]
        %v1326 = vld [vmem:[#allocation4 + $0x28] sm:$0xff]
        %v1327 = vld [vmem:[#allocation4 + $0x30] sm:$0xff]
        %v1328 = vld [vmem:[#allocation4 + $0x38] sm:$0xff]
        %v1329 = vpack.c.bf16 %v1318, %v1315
        %v1330 = vpack.c.bf16 %v1322, %v1321
        %v1331 = vpack.c.bf16 %v1324, %v1323
        %v1332 = vpack.c.bf16 %v1326, %v1325
        %v1333 = vpack.c.bf16 %v1328, %v1327
        %v1334 = vld [vmem:[%s11] sm:$0x1]
        %v1336 = vlaneseq
        %v1337 = vshrl.u32 %v1336, 7
        %v1338 = vsub.s32 0, %v1337
        %v1339 = vrot.slane %v1334, %v1338
        %v1342 = vsel %vm776, %v1329, 0
        %1344 = vmatprep.subr.bf16.mxu0 0
        %1345 = vmatpush1.bf16.msra.mxu0 %v1330
        %1346 = vmatprep.subr.bf16.mxu0 0
        %1347 = vmatpush1.bf16.msra.mxu0 %v1331
        %1348 = vmatprep.subr.bf16.mxu0 0
        %1349 = vmatpush1.bf16.msra.mxu0 %v1332
        %1350 = vmatprep.subr.bf16.mxu0 0
        %1351 = vmatpush1.bf16.msra.mxu0 %v1333
        %1352 = vmatprep.subr.bf16.mxu0 0
        %1353 = vmatpush1.bf16.msra.mxu0 0
        %1354 = vmatprep.subr.bf16.mxu0 0
        %1355 = vmatpush1.bf16.msra.mxu0 0
        %1356 = vmatprep.subr.bf16.mxu0 0
        %1357 = vmatpush1.bf16.msra.mxu0 0
        %1358 = vmatprep.subr.bf16.mxu0 0
        %1359 = vmatpush1.bf16.msra.mxu0 0
        %1360 = vmatprep.subr.bf16.mxu0 0
        %1361 = vmatpush1.bf16.msra.mxu0 0
        %1362 = vmatprep.subr.bf16.mxu0 0
        %1363 = vmatpush1.bf16.msra.mxu0 0
        %1364 = vmatprep.subr.bf16.mxu0 0
        %1365 = vmatpush1.bf16.msra.mxu0 0
        %1366 = vmatprep.subr.bf16.mxu0 0
        %1367 = vmatpush1.bf16.msra.mxu0 0
        %1368 = vmatprep.subr.bf16.mxu0 0
        %1369 = vmatpush1.bf16.msra.mxu0 0
        %1370 = vmatprep.subr.bf16.mxu0 0
        %1371 = vmatpush1.bf16.msra.mxu0 0
        %1372 = vmatprep.subr.bf16.mxu0 0
        %1373 = vmatpush1.bf16.msra.mxu0 0
        %1374 = vmatprep.subr.bf16.mxu0 0
        %1375 = vmatpush1.bf16.msra.mxu0 0
        %1376 = vmatprep.mubr.bf16.mxu0 0
        %1377 = vmatmul.mubr.bf16.gmra.mrb[0].mxu0 %v1342
        %v1378 = vpop.f32.mrb[0].mxu0
        %v1379 = vadd.f32 %v1339, %v1378
        %v1380 = vpop.f32.mrb[0].mxu0
        %v1381 = vpop.f32.mrb[0].mxu0
        %v1382 = vadd.f32 %v1339, %v1381
        %v1383 = vpop.f32.mrb[0].mxu0
        %1384 = vdwg.mxu0
        %v1385 = vadd.f32 %v1064, %v1379
        %v1386 = vadd.f32 %v1065, %v1382
        %v1387 = vld [vmem:[%s18] sm:$0x1]
        %v1388 = vld [vmem:[%s19] sm:$0x1]
        %v1389 = vsel %vm776, %v1385, 0.0
        %1390 = vadd.xlane.f32.xlu0 %v1389
        %v1391 = vpop.xlane.xlu0 %1390
        %v1392 = vsel %vm1025, %v1386, 0.0
        %1393 = vadd.xlane.f32.xlu0 %v1392
        %v1394 = vpop.xlane.xlu0 %1393
        %v1395 = vmul.f32 %v1391, %v1029
        %v1396 = vmul.f32 %v1394, %v1029
        %v1397 = vsub.f32 %v1385, %v1395
        %v1398 = vsub.f32 %v1386, %v1396
        %v1399 = vmul.f32 %v1397, %v1397
        %v1400 = vmul.f32 %v1398, %v1398
        %v1401 = vsel %vm776, %v1399, 0.0
        %1402 = vadd.xlane.f32.xlu0 %v1401
        %v1403 = vpop.xlane.xlu0 %1402
        %v1404 = vsel %vm1025, %v1400, 0.0
        %1405 = vadd.xlane.f32.xlu0 %v1404
        %v1406 = vpop.xlane.xlu0 %1405
        %v1407 = vmul.f32 %v1403, %v1029
        %v1408 = vmul.f32 %v1406, %v1029
        %v1409 = vadd.f32 %v1407, 1e-05
        %v1410 = vadd.f32 %v1408, 1e-05
        %v1411 = vrsqrt.pop %v1409
        %v1412 = vrsqrt.pop %v1410
        %v1413 = vmul.f32 %v1397, %v1411
        %v1414 = vmul.f32 %v1398, %v1412
        %v1416 = vlaneseq
        %v1417 = vshrl.u32 %v1416, 7
        %v1418 = vsub.s32 0, %v1417
        %v1419 = vrot.slane %v1387, %v1418
        %v1421 = vmul.f32 %v1413, %v1419
        %v1422 = vmul.f32 %v1414, %v1419
        %v1424 = vlaneseq
        %v1425 = vshrl.u32 %v1424, 7
        %v1426 = vsub.s32 0, %v1425
        %v1427 = vrot.slane %v1388, %v1426
        %v1429 = vadd.f32 %v1421, %v1427
        %v1430 = vadd.f32 %v1422, %v1427
        %v1431 = vld [vmem:[%s12] sm:$0xff]
        %v1432 = vld [vmem:[%s12 + $0x8] sm:$0xff]
        %v1433 = vld [vmem:[%s12 + $0x10] sm:$0xff]
        %v1434 = vld [vmem:[%s12 + $0x18] sm:$0xff]
        %v1435 = vld [vmem:[%s12 + $0x20] sm:$0xff]
        %v1436 = vld [vmem:[%s12 + $0x28] sm:$0xff]
        %v1437 = vld [vmem:[%s12 + $0x30] sm:$0xff]
        %v1438 = vld [vmem:[%s12 + $0x38] sm:$0xff]
        %v1439 = vld [vmem:[%s12 + $0x40] sm:$0xff]
        %v1440 = vld [vmem:[%s12 + $0x48] sm:$0xff]
        %v1441 = vld [vmem:[%s12 + $0x50] sm:$0xff]
        %v1442 = vld [vmem:[%s12 + $0x58] sm:$0xff]
        %v1443 = vld [vmem:[%s12 + $0x60] sm:$0xff]
        %v1444 = vld [vmem:[%s12 + $0x68] sm:$0xff]
        %v1445 = vld [vmem:[%s12 + $0x70] sm:$0xff]
        %v1446 = vld [vmem:[%s12 + $0x78] sm:$0xff]
        %v1447 = vpack.c.bf16 %v1430, %v1429
        %v1448 = vpack.c.bf16 %v1433, %v1431
        %v1449 = vpack.c.bf16 %v1434, %v1432
        %v1450 = vpack.c.bf16 %v1437, %v1435
        %v1451 = vpack.c.bf16 %v1438, %v1436
        %v1452 = vpack.c.bf16 %v1441, %v1439
        %v1453 = vpack.c.bf16 %v1442, %v1440
        %v1454 = vpack.c.bf16 %v1445, %v1443
        %v1455 = vpack.c.bf16 %v1446, %v1444
        %v1456 = vld [vmem:[%s13] sm:$0x3]
        %v1458 = vlaneseq
        %v1459 = vshrl.u32 %v1458, 7
        %v1460 = vsub.s32 0, %v1459
        %v1461 = vrot.slane %v1456, %v1460
        %v1462 = vlaneseq
        %v1463 = vshrl.u32 %v1462, 7
        %v1464 = vsub.s32 1, %v1463
        %v1465 = vrot.slane %v1456, %v1464
        %v1469 = vsel %vm776, %v1447, 0
        %1471 = vmatprep.subr.bf16.mxu0 %v1449
        %1472 = vmatpush1.bf16.msra.mxu0 %v1448
        %1473 = vmatprep.subr.bf16.mxu0 %v1451
        %1474 = vmatpush1.bf16.msra.mxu0 %v1450
        %1475 = vmatprep.subr.bf16.mxu0 %v1453
        %1476 = vmatpush1.bf16.msra.mxu0 %v1452
        %1477 = vmatprep.subr.bf16.mxu0 %v1455
        %1478 = vmatpush1.bf16.msra.mxu0 %v1454
        %1479 = vmatprep.subr.bf16.mxu0 0
        %1480 = vmatpush1.bf16.msra.mxu0 0
        %1481 = vmatprep.subr.bf16.mxu0 0
        %1482 = vmatpush1.bf16.msra.mxu0 0
        %1483 = vmatprep.subr.bf16.mxu0 0
        %1484 = vmatpush1.bf16.msra.mxu0 0
        %1485 = vmatprep.subr.bf16.mxu0 0
        %1486 = vmatpush1.bf16.msra.mxu0 0
        %1487 = vmatprep.subr.bf16.mxu0 0
        %1488 = vmatpush1.bf16.msra.mxu0 0
        %1489 = vmatprep.subr.bf16.mxu0 0
        %1490 = vmatpush1.bf16.msra.mxu0 0
        %1491 = vmatprep.subr.bf16.mxu0 0
        %1492 = vmatpush1.bf16.msra.mxu0 0
        %1493 = vmatprep.subr.bf16.mxu0 0
        %1494 = vmatpush1.bf16.msra.mxu0 0
        %1495 = vmatprep.subr.bf16.mxu0 0
        %1496 = vmatpush1.bf16.msra.mxu0 0
        %1497 = vmatprep.subr.bf16.mxu0 0
        %1498 = vmatpush1.bf16.msra.mxu0 0
        %1499 = vmatprep.subr.bf16.mxu0 0
        %1500 = vmatpush1.bf16.msra.mxu0 0
        %1501 = vmatprep.subr.bf16.mxu0 0
        %1502 = vmatpush1.bf16.msra.mxu0 0
        %1503 = vmatprep.mubr.bf16.mxu0 0
        %1504 = vmatmul.mubr.bf16.gmra.mrb[0].mxu0 %v1469
        %v1505 = vpop.f32.mrb[0].mxu0
        %v1506 = vadd.f32 %v1461, %v1505
        %v1507 = vpop.f32.mrb[0].mxu0
        %v1508 = vadd.f32 %v1465, %v1507
        %v1509 = vpop.f32.mrb[0].mxu0
        %v1510 = vadd.f32 %v1461, %v1509
        %v1511 = vpop.f32.mrb[0].mxu0
        %v1512 = vadd.f32 %v1465, %v1511
        %1513 = vdwg.mxu0
        %v1514 = vmax.f32 %v1506, 0.0
        %v1515 = vmax.f32 %v1508, 0.0
        %v1516 = vmax.f32 %v1510, 0.0
        %v1517 = vmax.f32 %v1512, 0.0
        %v1518 = vld [vmem:[%s14] sm:$0xff]
        %v1519 = vld [vmem:[%s14 + $0x8] sm:$0xff]
        %v1520 = vld [vmem:[%s14 + $0x10] sm:$0xff]
        %v1521 = vld [vmem:[%s14 + $0x18] sm:$0xff]
        %v1522 = vld [vmem:[%s14 + $0x20] sm:$0xff]
        %v1523 = vld [vmem:[%s14 + $0x28] sm:$0xff]
        %v1524 = vld [vmem:[%s14 + $0x30] sm:$0xff]
        %v1525 = vld [vmem:[%s14 + $0x38] sm:$0xff]
        %v1526 = vld [vmem:[%s14 + $0x40] sm:$0xff]
        %v1527 = vld [vmem:[%s14 + $0x48] sm:$0xff]
        %v1528 = vld [vmem:[%s14 + $0x50] sm:$0xff]
        %v1529 = vld [vmem:[%s14 + $0x58] sm:$0xff]
        %v1530 = vld [vmem:[%s14 + $0x60] sm:$0xff]
        %v1531 = vld [vmem:[%s14 + $0x68] sm:$0xff]
        %v1532 = vld [vmem:[%s14 + $0x70] sm:$0xff]
        %v1533 = vld [vmem:[%s14 + $0x78] sm:$0xff]
        %v1534 = vld [vmem:[%s14 + $0x80] sm:$0xff]
        %v1535 = vld [vmem:[%s14 + $0x88] sm:$0xff]
        %v1536 = vld [vmem:[%s14 + $0x90] sm:$0xff]
        %v1537 = vld [vmem:[%s14 + $0x98] sm:$0xff]
        %v1538 = vld [vmem:[%s14 + $0xa0] sm:$0xff]
        %v1539 = vld [vmem:[%s14 + $0xa8] sm:$0xff]
        %v1540 = vld [vmem:[%s14 + $0xb0] sm:$0xff]
        %v1541 = vld [vmem:[%s14 + $0xb8] sm:$0xff]
        %v1542 = vld [vmem:[%s14 + $0xc0] sm:$0xff]
        %v1543 = vld [vmem:[%s14 + $0xc8] sm:$0xff]
        %v1544 = vld [vmem:[%s14 + $0xd0] sm:$0xff]
        %v1545 = vld [vmem:[%s14 + $0xd8] sm:$0xff]
        %v1546 = vld [vmem:[%s14 + $0xe0] sm:$0xff]
        %v1547 = vld [vmem:[%s14 + $0xe8] sm:$0xff]
        %v1548 = vld [vmem:[%s14 + $0xf0] sm:$0xff]
        %v1549 = vld [vmem:[%s14 + $0xf8] sm:$0xff]
        %v1550 = vpack.c.bf16 %v1516, %v1514
        %v1551 = vpack.c.bf16 %v1517, %v1515
        %v1552 = vpack.c.bf16 %v1519, %v1518
        %v1553 = vpack.c.bf16 %v1521, %v1520
        %v1554 = vpack.c.bf16 %v1523, %v1522
        %v1555 = vpack.c.bf16 %v1525, %v1524
        %v1556 = vpack.c.bf16 %v1527, %v1526
        %v1557 = vpack.c.bf16 %v1529, %v1528
        %v1558 = vpack.c.bf16 %v1531, %v1530
        %v1559 = vpack.c.bf16 %v1533, %v1532
        %v1560 = vpack.c.bf16 %v1535, %v1534
        %v1561 = vpack.c.bf16 %v1537, %v1536
        %v1562 = vpack.c.bf16 %v1539, %v1538
        %v1563 = vpack.c.bf16 %v1541, %v1540
        %v1564 = vpack.c.bf16 %v1543, %v1542
        %v1565 = vpack.c.bf16 %v1545, %v1544
        %v1566 = vpack.c.bf16 %v1547, %v1546
        %v1567 = vpack.c.bf16 %v1549, %v1548
        %v1568 = vld [vmem:[%s15] sm:$0x1]
        %v1570 = vlaneseq
        %v1571 = vshrl.u32 %v1570, 7
        %v1572 = vsub.s32 0, %v1571
        %v1573 = vrot.slane %v1568, %v1572
        %1575 = vmatprep.subr.bf16.mxu0 0
        %1576 = vmatpush1.bf16.msra.mxu0 %v1552
        %1577 = vmatprep.subr.bf16.mxu0 0
        %1578 = vmatpush1.bf16.msra.mxu0 %v1553
        %1579 = vmatprep.subr.bf16.mxu0 0
        %1580 = vmatpush1.bf16.msra.mxu0 %v1554
        %1581 = vmatprep.subr.bf16.mxu0 0
        %1582 = vmatpush1.bf16.msra.mxu0 %v1555
        %1583 = vmatprep.subr.bf16.mxu0 0
        %1584 = vmatpush1.bf16.msra.mxu0 %v1556
        %1585 = vmatprep.subr.bf16.mxu0 0
        %1586 = vmatpush1.bf16.msra.mxu0 %v1557
        %1587 = vmatprep.subr.bf16.mxu0 0
        %1588 = vmatpush1.bf16.msra.mxu0 %v1558
        %1589 = vmatprep.subr.bf16.mxu0 0
        %1590 = vmatpush1.bf16.msra.mxu0 %v1559
        %1591 = vmatprep.subr.bf16.mxu0 0
        %1592 = vmatpush1.bf16.msra.mxu0 %v1560
        %1593 = vmatprep.subr.bf16.mxu0 0
        %1594 = vmatpush1.bf16.msra.mxu0 %v1561
        %1595 = vmatprep.subr.bf16.mxu0 0
        %1596 = vmatpush1.bf16.msra.mxu0 %v1562
        %1597 = vmatprep.subr.bf16.mxu0 0
        %1598 = vmatpush1.bf16.msra.mxu0 %v1563
        %1599 = vmatprep.subr.bf16.mxu0 0
        %1600 = vmatpush1.bf16.msra.mxu0 %v1564
        %1601 = vmatprep.subr.bf16.mxu0 0
        %1602 = vmatpush1.bf16.msra.mxu0 %v1565
        %1603 = vmatprep.subr.bf16.mxu0 0
        %1604 = vmatpush1.bf16.msra.mxu0 %v1566
        %1605 = vmatprep.subr.bf16.mxu0 0
        %1606 = vmatpush1.bf16.msra.mxu0 %v1567
        %1607 = vmatprep.mubr.bf16.mxu0 %v1551
        %1608 = vmatmul.mubr.bf16.gmra.mrb[0].mxu0 %v1550
        %v1609 = vpop.f32.mrb[0].mxu0
        %v1610 = vadd.f32 %v1573, %v1609
        %v1611 = vpop.f32.mrb[0].mxu0
        %v1612 = vpop.f32.mrb[0].mxu0
        %v1613 = vadd.f32 %v1573, %v1612
        %v1614 = vpop.f32.mrb[0].mxu0
        %1615 = vdwg.mxu0
        %v1616 = vadd.f32 %v1429, %v1610
        %v1617 = vadd.f32 %v1430, %v1613
        %v1618 = vld [vmem:[%s20] sm:$0x1]
        %v1619 = vld [vmem:[%s21] sm:$0x1]
        %v1620 = vsel %vm776, %v1616, 0.0
        %1621 = vadd.xlane.f32.xlu0 %v1620
        %v1622 = vpop.xlane.xlu0 %1621
        %v1623 = vsel %vm1025, %v1617, 0.0
        %1624 = vadd.xlane.f32.xlu0 %v1623
        %v1625 = vpop.xlane.xlu0 %1624
        %v1626 = vmul.f32 %v1622, %v1029
        %v1627 = vmul.f32 %v1625, %v1029
        %v1628 = vsub.f32 %v1616, %v1626
        %v1629 = vsub.f32 %v1617, %v1627
        %v1630 = vmul.f32 %v1628, %v1628
        %v1631 = vmul.f32 %v1629, %v1629
        %v1632 = vsel %vm776, %v1630, 0.0
        %1633 = vadd.xlane.f32.xlu0 %v1632
        %v1634 = vpop.xlane.xlu0 %1633
        %v1635 = vsel %vm1025, %v1631, 0.0
        %1636 = vadd.xlane.f32.xlu0 %v1635
        %v1637 = vpop.xlane.xlu0 %1636
        %v1638 = vmul.f32 %v1634, %v1029
        %v1639 = vmul.f32 %v1637, %v1029
        %v1640 = vadd.f32 %v1638, 1e-05
        %v1641 = vadd.f32 %v1639, 1e-05
        %v1642 = vrsqrt.pop %v1640
        %v1643 = vrsqrt.pop %v1641
        %v1644 = vmul.f32 %v1628, %v1642
        %v1645 = vmul.f32 %v1629, %v1643
        %v1647 = vlaneseq
        %v1648 = vshrl.u32 %v1647, 7
        %v1649 = vsub.s32 0, %v1648
        %v1650 = vrot.slane %v1618, %v1649
        %v1652 = vmul.f32 %v1644, %v1650
        %v1653 = vmul.f32 %v1645, %v1650
        %v1655 = vlaneseq
        %v1656 = vshrl.u32 %v1655, 7
        %v1657 = vsub.s32 0, %v1656
        %v1658 = vrot.slane %v1619, %v1657
        %v1660 = vadd.f32 %v1652, %v1658
        %v1661 = vadd.f32 %v1653, %v1658
        %1662 = vst.msk [vmem:[%s733] sm:$0xff] %vm776, %v1660
        %1663 = vst.msk [vmem:[%s733 + $0x8] sm:$0x1] %vm1025, %v1661
        %p1664 = scmp.lt.s32.totalorder %s35, 1
        %s1665 = scalar_select %p1664, %s35, 1
        %s1666 = smul.addr %s1665, 2
        %s1667 = smul.addr %s1666, 8
        %s1668 = scalar_lea.vmem %s22, %s1667
        // Predicated region
        $region117: #{tpu_custom_call.1} parent=107 // pred_check
          %p1669 = pneg %p525
        $region118: #{tpu_custom_call.1} parent=107 // pred_check_branch
          %1671 = sbr.rel (%p1669) target = $region120
        $region119: #{tpu_custom_call.1} parent=107 // pred_region
          _
        $region120: #{tpu_custom_call.1} parent=107 // pred_fallthru
          _
      $region108: #{tpu_custom_call.1} parent=5 // pred_fallthru
        _
      %p1672 = scmp.le.s32.totalorder 2, %s30
      // Predicated region
      $region121: #{tpu_custom_call.1} parent=5 // pred_check
        %p1673 = pneg %p1672
      $region122: #{tpu_custom_call.1} parent=5 // pred_check_branch
        %1675 = sbr.rel (%p1673) target = $region124
      $region123: #{tpu_custom_call.1} parent=5 // pred_region
        %s1676 = ssub.s32 %s30, 2
        // Predicated region
        $region125: #{tpu_custom_call.1} parent=123 // pred_check
          %p1677 = pneg %p531
        $region126: #{tpu_custom_call.1} parent=123 // pred_check_branch
          %1679 = sbr.rel (%p1677) target = $region128
        $region127: #{tpu_custom_call.1} parent=123 // pred_region
          %p1680 = scmp.lt.s32.totalorder %s36, 1
          %s1681 = scalar_select %p1680, %s36, 1
          %s1682 = smul.addr %s1681, 2
          %s1683 = smul.addr %s1682, 8
          %s1684 = scalar_lea.vmem %s22, %s1683
        $region128: #{tpu_custom_call.1} parent=123 // pred_fallthru
          _
      $region124: #{tpu_custom_call.1} parent=5 // pred_fallthru
        _
    $region6: #{tpu_custom_call.1} parent=1 // loop_footer
      %s34 = sadd.s32 1, %s30
    $region7: #{tpu_custom_call.1} parent=1 // loop_footer_branch
      %29 = sbr.rel target = $region3
    $region8: #{tpu_custom_call.1} parent=1 // loop_exit
      _
    %1685 = vsyncpa [#allocation3], 1
    %s1686 = scalar_lea.sflag [#allocation3], 1
    %1687 = vsyncpa %s1686, 1
    %1688 = vsyncpa [#allocation5], 1

</llo_original>
